<compile_context>
chip_gen: v7x
topology: tpu7x:2x2x1
jax: 0.10.0
libtpu: 0.0.40
codegen_flags: <defaults>
</compile_context>

<pallas_src>
import numpy as np
import jax
import jax.numpy as jnp
from jax.experimental import pallas as pl
from jax.experimental.pallas import tpu as pltpu

# ----------------------------- sizes (small, synthetic) ----------------------
B      = 2      # batch
J_IN   = 15     # input joints (joint_num = 15)
C_IN   = 3      # xyz channels -> get_model(3, 3, graph_L)
HID    = 32     # hidden graph-conv channels
KCHEB  = 3      # Chebyshev order
V      = 96     # synthetic mesh vertex count (real SMPL: 6890)
VPAD   = 128    # V padded to a full lane width
J_REG  = 17     # H36M joints produced by the regressor
VALID_KPTS_IDX = np.array([0, 1, 2, 3, 4, 5, 6, 7, 8, 11, 12, 13, 14, 15, 16],
                          dtype=np.int32)        # H36M_J17_TO_J15 analog
J_OUT  = int(VALID_KPTS_IDX.shape[0])            # 15

LANES      = B * VPAD    # 256: batch stacked on the lane axis
POSE_LANES = 128         # lane-dense pose block; first B*J_OUT lanes are real


# ----------------------------- fused kernel ----------------------------------
def fused_kernel(x_ref,
                 wlT_ref, blT_ref, ubdT_ref, lbdT_ref, l2bdT_ref,
                 wg1T_ref, bg1T_ref, wg2T_ref, bg2T_ref,
                 whT_ref, bhT_ref, jrbdT_ref,
                 out_ref, stack_ref):
    """Whole-batch fused meshnet + joint regression, channel-major [C, B*VPAD]."""
    # lift: [HID,3] @ [3, B*J_IN] -> [HID, B*J_IN]
    h = jnp.dot(wlT_ref[...], x_ref[...].astype(jnp.bfloat16),
                preferred_element_type=jnp.float32) + blT_ref[...]
    h = jnp.maximum(h, 0.0)

    # joint -> vertex upsample (block-diag over batch): -> [HID, LANES]
    hv = jnp.dot(h.astype(jnp.bfloat16), ubdT_ref[...],
                 preferred_element_type=jnp.float32)

    def cheb_conv(t0, wT_ref, bT_ref):
        # order-3 Chebyshev on the scaled Laplacian; L^2 precomputed on host so
        # the t1 and t2 MXU pushes are independent.
        t0b = t0.astype(jnp.bfloat16)
        t1 = jnp.dot(t0b, lbdT_ref[...], preferred_element_type=jnp.float32)
        t2 = 2.0 * jnp.dot(t0b, l2bdT_ref[...],
                           preferred_element_type=jnp.float32) - t0
        # stage T0/T1/T2 in a bf16 VMEM scratch (no concatenate copy), then one
        # stacked matmul [HID, 3*HID] @ [3*HID, LANES].
        stack_ref[0:HID, :]       = t0b
        stack_ref[HID:2 * HID, :] = t1.astype(jnp.bfloat16)
        stack_ref[2 * HID:, :]    = t2.astype(jnp.bfloat16)
        return jnp.dot(wT_ref[...], stack_ref[...],
                       preferred_element_type=jnp.float32) + bT_ref[...]

    h1 = jnp.maximum(cheb_conv(hv, wg1T_ref, bg1T_ref), 0.0)   # [HID, LANES]
    h2 = jnp.maximum(cheb_conv(h1, wg2T_ref, bg2T_ref), 0.0)   # [HID, LANES]

    # head: [3, HID] @ [HID, LANES] -> mesh (already in graph_perm_reverse order)
    meshT = jnp.dot(whT_ref[...], h2.astype(jnp.bfloat16),
                    preferred_element_type=jnp.float32) + bhT_ref[...]

    # single merged lane-dense output block [3, LANES + POSE_LANES]
    out_ref[:, 0:LANES] = meshT
    # fused joint regression, kept in f32: [3, LANES] @ [LANES, POSE_LANES]
    out_ref[:, LANES:] = jnp.dot(meshT, jrbdT_ref[...],
                                 preferred_element_type=jnp.float32)


# ----------------------------- pallas wrapper ---------------------------------
_PARAM_ORDER = ("W_liftT", "b_liftT", "U_bdT", "L_bdT", "L2_bdT",
                "Wg1T", "bg1T", "Wg2T", "bg2T",
                "W_headT", "b_headT", "Jreg_bdT")


def pointcloud2mesh_forward(pose_input, params):
    # channel-major input with the batch stacked on lanes: [3, B*J_IN]
    x = jnp.transpose(pose_input, (2, 0, 1)).reshape(C_IN, B * J_IN)
    ordered = [params[k] for k in _PARAM_ORDER]

    vmem = pl.BlockSpec(memory_space=pltpu.MemorySpace.VMEM)
    out = pl.pallas_call(
        fused_kernel,
        out_shape=jax.ShapeDtypeStruct((C_IN, LANES + POSE_LANES), jnp.float32),
        in_specs=[vmem] * (1 + len(ordered)),
        out_specs=vmem,
        scratch_shapes=[pltpu.VMEM((KCHEB * HID, LANES), jnp.bfloat16)],
    )(x, *ordered)

    # back to the PyTorch layouts
    mesh = out[:, :LANES].reshape(C_IN, B, VPAD).transpose(1, 2, 0)[:, :V, :]
    pose = (out[:, LANES:LANES + B * J_OUT]
            .reshape(C_IN, B, J_OUT).transpose(1, 2, 0))
    return {"mesh_out": mesh, "pose": pose}


# ----------------------------- deterministic parameter init -------------------
def build_params():
    ks = jax.random.split(jax.random.PRNGKey(0), 8)

    def nrm(k, shape, scale=0.1):
        return np.asarray(scale * jax.random.normal(k, shape, dtype=jnp.float32))

    # synthetic ring-graph normalized & scaled Laplacian (stand-in for graph_L)
    A = np.zeros((V, V), dtype=np.float32)
    idx = np.arange(V)
    A[idx, (idx + 1) % V] = 1.0
    A[idx, (idx - 1) % V] = 1.0
    dinv = 1.0 / np.sqrt(A.sum(1))
    L_norm = np.eye(V, dtype=np.float32) - dinv[:, None] * A * dinv[None, :]
    L_scaled = (L_norm - np.eye(V, dtype=np.float32)).astype(np.float32)  # lmax ~ 2

    # joint -> vertex upsampler (nonnegative, row-normalized)
    U = np.asarray(jax.random.uniform(ks[0], (V, J_IN), dtype=jnp.float32))
    U = U / U.sum(1, keepdims=True)
    # synthetic H36M joint regressor [17, V] (row-normalized)
    Jreg = np.asarray(jax.random.uniform(ks[1], (J_REG, V), dtype=jnp.float32))
    Jreg = Jreg / Jreg.sum(1, keepdims=True)

    W_lift = nrm(ks[2], (C_IN, HID))
    W_gc1  = nrm(ks[3], (KCHEB * HID, HID))
    W_gc2  = nrm(ks[4], (KCHEB * HID, HID))
    W_head = nrm(ks[5], (HID, C_IN))
    # synthetic graph_perm_reverse[:face.max()+1]
    perm = np.asarray(jax.random.permutation(ks[6], V)).astype(np.int32)

    # ---- fold host-side gathers into the constants --------------------------
    U_p    = U[perm, :]                        # run the graph in permuted order
    L_p    = L_scaled[perm][:, perm]
    L2_p   = (L_p @ L_p).astype(np.float32)
    Jreg15 = Jreg[VALID_KPTS_IDX, :]           # (Jreg@mesh)[valid] == Jreg[valid]@mesh

    # ---- pad V -> VPAD with zeros, then build batch block-diagonals ----------
    U_pad  = np.zeros((VPAD, J_IN), np.float32); U_pad[:V] = U_p
    L_pad  = np.zeros((VPAD, VPAD), np.float32); L_pad[:V, :V] = L_p
    L2_pad = np.zeros((VPAD, VPAD), np.float32); L2_pad[:V, :V] = L2_p
    Jr_pad = np.zeros((J_OUT, VPAD), np.float32); Jr_pad[:, :V] = Jreg15

    U_bdT  = np.zeros((B * J_IN, LANES), np.float32)
    L_bdT  = np.zeros((LANES, LANES), np.float32)
    L2_bdT = np.zeros((LANES, LANES), np.float32)
    Jr_bdT = np.zeros((LANES, POSE_LANES), np.float32)
    for b in range(B):
        U_bdT[b * J_IN:(b + 1) * J_IN, b * VPAD:(b + 1) * VPAD] = U_pad.T
        L_bdT[b * VPAD:(b + 1) * VPAD, b * VPAD:(b + 1) * VPAD] = L_pad.T
        L2_bdT[b * VPAD:(b + 1) * VPAD, b * VPAD:(b + 1) * VPAD] = L2_pad.T
        Jr_bdT[b * VPAD:(b + 1) * VPAD, b * J_OUT:(b + 1) * J_OUT] = Jr_pad.T

    bf16 = jnp.bfloat16
    params = {
        "W_liftT":  jnp.asarray(W_lift.T, bf16),          # [HID, 3]
        "b_liftT":  jnp.zeros((HID, 1), jnp.float32),
        "U_bdT":    jnp.asarray(U_bdT, bf16),              # [B*J_IN, LANES]
        "L_bdT":    jnp.asarray(L_bdT, bf16),              # [LANES, LANES]
        "L2_bdT":   jnp.asarray(L2_bdT, bf16),             # [LANES, LANES]
        "Wg1T":     jnp.asarray(W_gc1.T, bf16),            # [HID, 3*HID]
        "bg1T":     jnp.zeros((HID, 1), jnp.float32),
        "Wg2T":     jnp.asarray(W_gc2.T, bf16),            # [HID, 3*HID]
        "bg2T":     jnp.zeros((HID, 1), jnp.float32),
        "W_headT":  jnp.asarray(W_head.T, bf16),           # [3, HID]
        "b_headT":  jnp.zeros((C_IN, 1), jnp.float32),
        "Jreg_bdT": jnp.asarray(Jr_bdT, jnp.float32),      # [LANES, POSE_LANES], f32
    }
    raw = dict(W_lift=W_lift, W_gc1=W_gc1, W_gc2=W_gc2, W_head=W_head,
               U_p=U_p, L_p=L_p, Jreg15=Jreg15)
    return params, raw


# ----------------------------- pure-numpy f32 reference -----------------------
def reference_forward(pose_input, raw):
    W_lift, W_gc1, W_gc2, W_head = (raw["W_lift"], raw["W_gc1"],
                                    raw["W_gc2"], raw["W_head"])
    U_p, L_p, Jreg15 = raw["U_p"], raw["L_p"], raw["Jreg15"]
    x = np.asarray(pose_input)
    meshes, poses = [], []
    for b in range(B):
        h = np.maximum(x[b] @ W_lift, 0.0)        # [J_IN, HID]
        hv = U_p @ h                              # [V, HID]

        def cheb(t0, W):
            t1 = L_p @ t0
            t2 = 2.0 * (L_p @ t1) - t0
            return np.concatenate([t0, t1, t2], axis=1) @ W

        h1 = np.maximum(cheb(hv, W_gc1), 0.0)
        h2 = np.maximum(cheb(h1, W_gc2), 0.0)
        mesh = h2 @ W_head                        # [V, 3] (permuted order)
        meshes.append(mesh)
        poses.append(Jreg15 @ mesh)               # [15, 3]
    return np.stack(meshes), np.stack(poses)


# ----------------------------- main -------------------------------------------
if __name__ == "__main__":
    params, raw = build_params()

    # pose_input: [B, joint_num=15, 3]
    pose_input = jax.random.normal(jax.random.PRNGKey(0), (B, J_IN, C_IN),
                                   dtype=jnp.float32)

    fwd = jax.jit(pointcloud2mesh_forward)
    out = fwd(pose_input, params)
    jax.block_until_ready(out["mesh_out"])
    jax.block_until_ready(out["pose"])

    assert out["mesh_out"].shape == (B, V, 3)
    assert out["pose"].shape == (B, J_OUT, 3)
    assert bool(jnp.all(jnp.isfinite(out["mesh_out"])))
    assert bool(jnp.all(jnp.isfinite(out["pose"])))

    mesh_ref, pose_ref = reference_forward(pose_input, raw)
    assert np.allclose(np.asarray(out["mesh_out"]), mesh_ref, rtol=5e-2, atol=5e-2)
    assert np.allclose(np.asarray(out["pose"]), pose_ref, rtol=5e-2, atol=5e-2)

    print("KERNEL_OK")
</pallas_src>

<mosaic_0001>
module attributes {stable_mosaic.version = 11 : i64} {
  func.func @fused_kernel(%arg0: memref<3x30xf32, #tpu.memory_space<vmem>>, %arg1: memref<32x3xbf16, #tpu.memory_space<vmem>>, %arg2: memref<32x1xf32, #tpu.memory_space<vmem>>, %arg3: memref<30x256xbf16, #tpu.memory_space<vmem>>, %arg4: memref<256x256xbf16, #tpu.memory_space<vmem>>, %arg5: memref<256x256xbf16, #tpu.memory_space<vmem>>, %arg6: memref<32x96xbf16, #tpu.memory_space<vmem>>, %arg7: memref<32x1xf32, #tpu.memory_space<vmem>>, %arg8: memref<32x96xbf16, #tpu.memory_space<vmem>>, %arg9: memref<32x1xf32, #tpu.memory_space<vmem>>, %arg10: memref<3x32xbf16, #tpu.memory_space<vmem>>, %arg11: memref<3x1xf32, #tpu.memory_space<vmem>>, %arg12: memref<256x128xf32, #tpu.memory_space<vmem>>, %arg13: memref<3x384xf32, #tpu.memory_space<vmem>>, %arg14: memref<96x256xbf16, #tpu.memory_space<vmem>>) attributes {dimension_semantics = [], scalar_prefetch = 0 : i64, scratch_operands = 1 : i64, tpu.core_type = #tpu.core_type<tc>} {
    %c0 = arith.constant 0 : index
    %c0_0 = arith.constant 0 : index
    %0 = vector.load %arg1[%c0, %c0_0] : memref<32x3xbf16, #tpu.memory_space<vmem>>, vector<32x3xbf16>
    %c0_1 = arith.constant 0 : index
    %c0_2 = arith.constant 0 : index
    %1 = vector.load %arg0[%c0_1, %c0_2] : memref<3x30xf32, #tpu.memory_space<vmem>>, vector<3x30xf32>
    %2 = arith.truncf %1 : vector<3x30xf32> to vector<3x30xbf16>
    %cst = arith.constant dense<0.000000e+00> : vector<32x30xf32>
    %3 = tpu.matmul %0, %2, %cst {dimension_numbers = #tpu.dot_dimension_numbers<[1], [0], [0], [1], [0, 0, 1, 1], [], []>} : vector<32x3xbf16>, vector<3x30xbf16>, vector<32x30xf32> -> vector<32x30xf32>
    %c0_3 = arith.constant 0 : index
    %c0_4 = arith.constant 0 : index
    %4 = vector.load %arg2[%c0_3, %c0_4] : memref<32x1xf32, #tpu.memory_space<vmem>>, vector<32x1xf32>
    %5 = vector.broadcast %4 : vector<32x1xf32> to vector<32x30xf32>
    %6 = arith.addf %3, %5 : vector<32x30xf32>
    %cst_5 = arith.constant 0.000000e+00 : f32
    %7 = vector.broadcast %cst_5 : f32 to vector<32x30xf32>
    %8 = arith.maximumf %6, %7 : vector<32x30xf32>
    %9 = arith.truncf %8 : vector<32x30xf32> to vector<32x30xbf16>
    %c0_6 = arith.constant 0 : index
    %c0_7 = arith.constant 0 : index
    %10 = vector.load %arg3[%c0_6, %c0_7] : memref<30x256xbf16, #tpu.memory_space<vmem>>, vector<30x256xbf16>
    %cst_8 = arith.constant dense<0.000000e+00> : vector<32x256xf32>
    %11 = tpu.matmul %9, %10, %cst_8 {dimension_numbers = #tpu.dot_dimension_numbers<[1], [0], [0], [1], [0, 0, 1, 1], [], []>} : vector<32x30xbf16>, vector<30x256xbf16>, vector<32x256xf32> -> vector<32x256xf32>
    %12 = arith.truncf %11 : vector<32x256xf32> to vector<32x256xbf16>
    %c0_9 = arith.constant 0 : index
    %c0_10 = arith.constant 0 : index
    %13 = vector.load %arg4[%c0_9, %c0_10] : memref<256x256xbf16, #tpu.memory_space<vmem>>, vector<256x256xbf16>
    %cst_11 = arith.constant dense<0.000000e+00> : vector<32x256xf32>
    %14 = tpu.matmul %12, %13, %cst_11 {dimension_numbers = #tpu.dot_dimension_numbers<[1], [0], [0], [1], [0, 0, 1, 1], [], []>} : vector<32x256xbf16>, vector<256x256xbf16>, vector<32x256xf32> -> vector<32x256xf32>
    %c0_12 = arith.constant 0 : index
    %c0_13 = arith.constant 0 : index
    %15 = vector.load %arg5[%c0_12, %c0_13] : memref<256x256xbf16, #tpu.memory_space<vmem>>, vector<256x256xbf16>
    %cst_14 = arith.constant dense<0.000000e+00> : vector<32x256xf32>
    %16 = tpu.matmul %12, %15, %cst_14 {dimension_numbers = #tpu.dot_dimension_numbers<[1], [0], [0], [1], [0, 0, 1, 1], [], []>} : vector<32x256xbf16>, vector<256x256xbf16>, vector<32x256xf32> -> vector<32x256xf32>
    %cst_15 = arith.constant 2.000000e+00 : f32
    %17 = vector.broadcast %cst_15 : f32 to vector<32x256xf32>
    %18 = arith.mulf %17, %16 : vector<32x256xf32>
    %19 = arith.subf %18, %11 : vector<32x256xf32>
    %c0_16 = arith.constant 0 : index
    %c0_17 = arith.constant 0 : index
    %20 = vector.load %arg14[%c0_16, %c0_17] : memref<96x256xbf16, #tpu.memory_space<vmem>>, vector<32x256xbf16>
    tpu.vector_store %arg14[%c0_16, %c0_17], %12 {strides = array<i32>} : memref<96x256xbf16, #tpu.memory_space<vmem>>, vector<32x256xbf16>,
    %21 = arith.truncf %14 : vector<32x256xf32> to vector<32x256xbf16>
    %c32 = arith.constant 32 : index
    %c0_18 = arith.constant 0 : index
    %22 = vector.load %arg14[%c32, %c0_18] : memref<96x256xbf16, #tpu.memory_space<vmem>>, vector<32x256xbf16>
    tpu.vector_store %arg14[%c32, %c0_18], %21 {strides = array<i32>} : memref<96x256xbf16, #tpu.memory_space<vmem>>, vector<32x256xbf16>,
    %23 = arith.truncf %19 : vector<32x256xf32> to vector<32x256xbf16>
    %c64 = arith.constant 64 : index
    %c0_19 = arith.constant 0 : index
    %24 = vector.load %arg14[%c64, %c0_19] : memref<96x256xbf16, #tpu.memory_space<vmem>>, vector<32x256xbf16>
    tpu.vector_store %arg14[%c64, %c0_19], %23 {strides = array<i32>} : memref<96x256xbf16, #tpu.memory_space<vmem>>, vector<32x256xbf16>,
    %c0_20 = arith.constant 0 : index
    %c0_21 = arith.constant 0 : index
    %25 = vector.load %arg6[%c0_20, %c0_21] : memref<32x96xbf16, #tpu.memory_space<vmem>>, vector<32x96xbf16>
    %c0_22 = arith.constant 0 : index
    %c0_23 = arith.constant 0 : index
    %26 = vector.load %arg14[%c0_22, %c0_23] : memref<96x256xbf16, #tpu.memory_space<vmem>>, vector<96x256xbf16>
    %cst_24 = arith.constant dense<0.000000e+00> : vector<32x256xf32>
    %27 = tpu.matmul %25, %26, %cst_24 {dimension_numbers = #tpu.dot_dimension_numbers<[1], [0], [0], [1], [0, 0, 1, 1], [], []>} : vector<32x96xbf16>, vector<96x256xbf16>, vector<32x256xf32> -> vector<32x256xf32>
    %c0_25 = arith.constant 0 : index
    %c0_26 = arith.constant 0 : index
    %28 = vector.load %arg7[%c0_25, %c0_26] : memref<32x1xf32, #tpu.memory_space<vmem>>, vector<32x1xf32>
    %29 = vector.broadcast %28 : vector<32x1xf32> to vector<32x256xf32>
    %30 = arith.addf %27, %29 : vector<32x256xf32>
    %cst_27 = arith.constant 0.000000e+00 : f32
    %31 = vector.broadcast %cst_27 : f32 to vector<32x256xf32>
    %32 = arith.maximumf %30, %31 : vector<32x256xf32>
    %33 = arith.truncf %32 : vector<32x256xf32> to vector<32x256xbf16>
    %c0_28 = arith.constant 0 : index
    %c0_29 = arith.constant 0 : index
    %34 = vector.load %arg4[%c0_28, %c0_29] : memref<256x256xbf16, #tpu.memory_space<vmem>>, vector<256x256xbf16>
    %cst_30 = arith.constant dense<0.000000e+00> : vector<32x256xf32>
    %35 = tpu.matmul %33, %34, %cst_30 {dimension_numbers = #tpu.dot_dimension_numbers<[1], [0], [0], [1], [0, 0, 1, 1], [], []>} : vector<32x256xbf16>, vector<256x256xbf16>, vector<32x256xf32> -> vector<32x256xf32>
    %c0_31 = arith.constant 0 : index
    %c0_32 = arith.constant 0 : index
    %36 = vector.load %arg5[%c0_31, %c0_32] : memref<256x256xbf16, #tpu.memory_space<vmem>>, vector<256x256xbf16>
    %cst_33 = arith.constant dense<0.000000e+00> : vector<32x256xf32>
    %37 = tpu.matmul %33, %36, %cst_33 {dimension_numbers = #tpu.dot_dimension_numbers<[1], [0], [0], [1], [0, 0, 1, 1], [], []>} : vector<32x256xbf16>, vector<256x256xbf16>, vector<32x256xf32> -> vector<32x256xf32>
    %cst_34 = arith.constant 2.000000e+00 : f32
    %38 = vector.broadcast %cst_34 : f32 to vector<32x256xf32>
    %39 = arith.mulf %38, %37 : vector<32x256xf32>
    %40 = arith.subf %39, %32 : vector<32x256xf32>
    %c0_35 = arith.constant 0 : index
    %c0_36 = arith.constant 0 : index
    %41 = vector.load %arg14[%c0_35, %c0_36] : memref<96x256xbf16, #tpu.memory_space<vmem>>, vector<32x256xbf16>
    tpu.vector_store %arg14[%c0_35, %c0_36], %33 {strides = array<i32>} : memref<96x256xbf16, #tpu.memory_space<vmem>>, vector<32x256xbf16>,
    %42 = arith.truncf %35 : vector<32x256xf32> to vector<32x256xbf16>
    %c32_37 = arith.constant 32 : index
    %c0_38 = arith.constant 0 : index
    %43 = vector.load %arg14[%c32_37, %c0_38] : memref<96x256xbf16, #tpu.memory_space<vmem>>, vector<32x256xbf16>
    tpu.vector_store %arg14[%c32_37, %c0_38], %42 {strides = array<i32>} : memref<96x256xbf16, #tpu.memory_space<vmem>>, vector<32x256xbf16>,
    %44 = arith.truncf %40 : vector<32x256xf32> to vector<32x256xbf16>
    %c64_39 = arith.constant 64 : index
    %c0_40 = arith.constant 0 : index
    %45 = vector.load %arg14[%c64_39, %c0_40] : memref<96x256xbf16, #tpu.memory_space<vmem>>, vector<32x256xbf16>
    tpu.vector_store %arg14[%c64_39, %c0_40], %44 {strides = array<i32>} : memref<96x256xbf16, #tpu.memory_space<vmem>>, vector<32x256xbf16>,
    %c0_41 = arith.constant 0 : index
    %c0_42 = arith.constant 0 : index
    %46 = vector.load %arg8[%c0_41, %c0_42] : memref<32x96xbf16, #tpu.memory_space<vmem>>, vector<32x96xbf16>
    %c0_43 = arith.constant 0 : index
    %c0_44 = arith.constant 0 : index
    %47 = vector.load %arg14[%c0_43, %c0_44] : memref<96x256xbf16, #tpu.memory_space<vmem>>, vector<96x256xbf16>
    %cst_45 = arith.constant dense<0.000000e+00> : vector<32x256xf32>
    %48 = tpu.matmul %46, %47, %cst_45 {dimension_numbers = #tpu.dot_dimension_numbers<[1], [0], [0], [1], [0, 0, 1, 1], [], []>} : vector<32x96xbf16>, vector<96x256xbf16>, vector<32x256xf32> -> vector<32x256xf32>
    %c0_46 = arith.constant 0 : index
    %c0_47 = arith.constant 0 : index
    %49 = vector.load %arg9[%c0_46, %c0_47] : memref<32x1xf32, #tpu.memory_space<vmem>>, vector<32x1xf32>
    %50 = vector.broadcast %49 : vector<32x1xf32> to vector<32x256xf32>
    %51 = arith.addf %48, %50 : vector<32x256xf32>
    %cst_48 = arith.constant 0.000000e+00 : f32
    %52 = vector.broadcast %cst_48 : f32 to vector<32x256xf32>
    %53 = arith.maximumf %51, %52 : vector<32x256xf32>
    %c0_49 = arith.constant 0 : index
    %c0_50 = arith.constant 0 : index
    %54 = vector.load %arg10[%c0_49, %c0_50] : memref<3x32xbf16, #tpu.memory_space<vmem>>, vector<3x32xbf16>
    %55 = arith.truncf %53 : vector<32x256xf32> to vector<32x256xbf16>
    %cst_51 = arith.constant dense<0.000000e+00> : vector<3x256xf32>
    %56 = tpu.matmul %54, %55, %cst_51 {dimension_numbers = #tpu.dot_dimension_numbers<[1], [0], [0], [1], [0, 0, 1, 1], [], []>} : vector<3x32xbf16>, vector<32x256xbf16>, vector<3x256xf32> -> vector<3x256xf32>
    %c0_52 = arith.constant 0 : index
    %c0_53 = arith.constant 0 : index
    %57 = vector.load %arg11[%c0_52, %c0_53] : memref<3x1xf32, #tpu.memory_space<vmem>>, vector<3x1xf32>
    %58 = vector.broadcast %57 : vector<3x1xf32> to vector<3x256xf32>
    %59 = arith.addf %56, %58 : vector<3x256xf32>
    %c0_54 = arith.constant 0 : index
    %c0_55 = arith.constant 0 : index
    %60 = vector.load %arg13[%c0_54, %c0_55] : memref<3x384xf32, #tpu.memory_space<vmem>>, vector<3x256xf32>
    tpu.vector_store %arg13[%c0_54, %c0_55], %59 {strides = array<i32>} : memref<3x384xf32, #tpu.memory_space<vmem>>, vector<3x256xf32>,
    %c0_56 = arith.constant 0 : index
    %c0_57 = arith.constant 0 : index
    %61 = vector.load %arg12[%c0_56, %c0_57] : memref<256x128xf32, #tpu.memory_space<vmem>>, vector<256x128xf32>
    %cst_58 = arith.constant dense<0.000000e+00> : vector<3x128xf32>
    %62 = tpu.matmul %59, %61, %cst_58 {dimension_numbers = #tpu.dot_dimension_numbers<[1], [0], [0], [1], [0, 0, 1, 1], [], []>} : vector<3x256xf32>, vector<256x128xf32>, vector<3x128xf32> -> vector<3x128xf32>
    %c0_59 = arith.constant 0 : index
    %c256 = arith.constant 256 : index
    %63 = vector.load %arg13[%c0_59, %c256] : memref<3x384xf32, #tpu.memory_space<vmem>>, vector<3x128xf32>
    tpu.vector_store %arg13[%c0_59, %c256], %62 {strides = array<i32>} : memref<3x384xf32, #tpu.memory_space<vmem>>, vector<3x128xf32>,
    return
  }
}

</mosaic_0001>

<llo_original>
// kernel: pointcloud2mesh_forward.1
$region0: #{pointcloud2mesh_forward.1}
  #allocation0 [shape = 'u32[]', space=smem, size = 0x4, offset = 0x4, fixed_abs, tag = 'smem constant byte address 0x4 - core index']
  #allocation1 [shape = 'u32[144,128]{1,0:T(1,128)}', space=vmem, size = 0x12000, scoped, tag = 'internal scratch']
  #allocation2 [shape = 'bf16[96,256]{1,0:T(16,128)(2,1)}', space=vmem, size = 0xc000, scoped, tag = 'scratch operand']
  %s0 = inlined_call_operand.vmem [shape: f32[3,30], index: 0, kind: input, shape index: {}]
  %s1 = inlined_call_operand.vmem [shape: bf16[32,3], index: 1, kind: input, shape index: {}]
  %s2 = inlined_call_operand.vmem [shape: f32[32,1], index: 2, kind: input, shape index: {}]
  %s3 = inlined_call_operand.vmem [shape: bf16[30,256], index: 3, kind: input, shape index: {}]
  %s4 = inlined_call_operand.hbm [shape: bf16[256,256], index: 4, kind: input, shape index: {}]
  %s5 = inlined_call_operand.hbm [shape: bf16[256,256], index: 5, kind: input, shape index: {}]
  %s6 = inlined_call_operand.vmem [shape: bf16[32,96], index: 6, kind: input, shape index: {}]
  %s7 = inlined_call_operand.vmem [shape: f32[32,1], index: 7, kind: input, shape index: {}]
  %s8 = inlined_call_operand.vmem [shape: bf16[32,96], index: 8, kind: input, shape index: {}]
  %s9 = inlined_call_operand.vmem [shape: f32[32,1], index: 9, kind: input, shape index: {}]
  %s10 = inlined_call_operand.vmem [shape: bf16[3,32], index: 10, kind: input, shape index: {}]
  %s11 = inlined_call_operand.vmem [shape: f32[3,1], index: 11, kind: input, shape index: {}]
  %s12 = inlined_call_operand.hbm [shape: f32[256,128], index: 12, kind: input, shape index: {}]
  %s13 = inlined_call_operand.vmem [shape: f32[3,384], index: 13, kind: output, shape index: {}]
  %s14 = sld [smem:[#allocation0]]
  $region74: #{pointcloud2mesh_forward.1} parent=0
    _
  %s16 = ssub.s32 1, %s14
  %s17 = scalar_select 0, %s16, %s14
  $region1: #{pointcloud2mesh_forward.1} parent=0
    #allocation3 [shape = 'u8[131072]{0}', space=vmem, size = 0x20000, scoped, tag = 'input window, operand 4, single buffered']
    #allocation4 [shape = 's32[1]{0}', space=sflag, size = 0x4, scoped, tag = 'scoped memory for pointcloud2mesh_forward.1']
    #allocation5 [shape = 'u8[131072]{0}', space=vmem, size = 0x20000, scoped, tag = 'input window, operand 5, single buffered']
    #allocation6 [shape = 's32[1]{0}', space=sflag, size = 0x4, scoped, tag = 'scoped memory for pointcloud2mesh_forward.1']
    #allocation7 [shape = 'u8[131072]{0}', space=vmem, size = 0x20000, scoped, tag = 'input window, operand 12, single buffered']
    %18 = vsyncpa [#allocation4], 0
    %19 = vsyncpa [#allocation6], 0
    // Predicated region
    $region2: #{pointcloud2mesh_forward.1} parent=1 // pred_check
      _
    $region3: #{pointcloud2mesh_forward.1} parent=1 // pred_check_branch
      %21 = sbr.rel (0) target = $region5
    $region4: #{pointcloud2mesh_forward.1} parent=1 // pred_region
      _
    $region5: #{pointcloud2mesh_forward.1} parent=1 // pred_fallthru
      _
    // Predicated region
    $region6: #{pointcloud2mesh_forward.1} parent=1 // pred_check
      _
    $region7: #{pointcloud2mesh_forward.1} parent=1 // pred_check_branch
      %23 = sbr.rel (0) target = $region9
    $region8: #{pointcloud2mesh_forward.1} parent=1 // pred_region
      _
    $region9: #{pointcloud2mesh_forward.1} parent=1 // pred_fallthru
      _
    // Predicated region
    $region10: #{pointcloud2mesh_forward.1} parent=1 // pred_check
      _
    $region11: #{pointcloud2mesh_forward.1} parent=1 // pred_check_branch
      %25 = sbr.rel (0) target = $region13
    $region12: #{pointcloud2mesh_forward.1} parent=1 // pred_region
      _
    $region13: #{pointcloud2mesh_forward.1} parent=1 // pred_fallthru
      _
    // Predicated region
    $region14: #{pointcloud2mesh_forward.1} parent=1 // pred_check
      _
    $region15: #{pointcloud2mesh_forward.1} parent=1 // pred_check_branch
      %27 = sbr.rel (0) target = $region17
    $region16: #{pointcloud2mesh_forward.1} parent=1 // pred_region
      _
    $region17: #{pointcloud2mesh_forward.1} parent=1 // pred_fallthru
      _
    // Predicated region
    $region18: #{pointcloud2mesh_forward.1} parent=1 // pred_check
      _
    $region19: #{pointcloud2mesh_forward.1} parent=1 // pred_check_branch
      %29 = sbr.rel (0) target = $region21
    $region20: #{pointcloud2mesh_forward.1} parent=1 // pred_region
      %s31 = ssub.s32 4096, 4096
      %32 = vsyncadd [#allocation4], %s31
      %s33 = sshll.u32 [#allocation3], 4
      %s34 = int_to_ptr.vmem [resolvable:$true] %s33
      %39 = dma.hbm_to_vmem [thread:$0]  %s4, 4096, %s34, [#allocation4], 128, 128, 8
    $region21: #{pointcloud2mesh_forward.1} parent=1 // pred_fallthru
      _
    // Predicated region
    $region22: #{pointcloud2mesh_forward.1} parent=1 // pred_check
      _
    $region23: #{pointcloud2mesh_forward.1} parent=1 // pred_check_branch
      %41 = sbr.rel (0) target = $region25
    $region24: #{pointcloud2mesh_forward.1} parent=1 // pred_region
      %s43 = ssub.s32 4096, 4096
      %44 = vsyncadd [#allocation6], %s43
      %s45 = sshll.u32 [#allocation5], 4
      %s46 = int_to_ptr.vmem [resolvable:$true] %s45
      %51 = dma.hbm_to_vmem [thread:$0]  %s5, 4096, %s46, [#allocation6], 128, 128, 8
    $region25: #{pointcloud2mesh_forward.1} parent=1 // pred_fallthru
      _
    // Predicated region
    $region26: #{pointcloud2mesh_forward.1} parent=1 // pred_check
      _
    $region27: #{pointcloud2mesh_forward.1} parent=1 // pred_check_branch
      %53 = sbr.rel (0) target = $region29
    $region28: #{pointcloud2mesh_forward.1} parent=1 // pred_region
      _
    $region29: #{pointcloud2mesh_forward.1} parent=1 // pred_fallthru
      _
    // Predicated region
    $region30: #{pointcloud2mesh_forward.1} parent=1 // pred_check
      _
    $region31: #{pointcloud2mesh_forward.1} parent=1 // pred_check_branch
      %55 = sbr.rel (0) target = $region33
    $region32: #{pointcloud2mesh_forward.1} parent=1 // pred_region
      _
    $region33: #{pointcloud2mesh_forward.1} parent=1 // pred_fallthru
      _
    // Predicated region
    $region34: #{pointcloud2mesh_forward.1} parent=1 // pred_check
      _
    $region35: #{pointcloud2mesh_forward.1} parent=1 // pred_check_branch
      %57 = sbr.rel (0) target = $region37
    $region36: #{pointcloud2mesh_forward.1} parent=1 // pred_region
      _
    $region37: #{pointcloud2mesh_forward.1} parent=1 // pred_fallthru
      _
    // Predicated region
    $region38: #{pointcloud2mesh_forward.1} parent=1 // pred_check
      _
    $region39: #{pointcloud2mesh_forward.1} parent=1 // pred_check_branch
      %59 = sbr.rel (0) target = $region41
    $region40: #{pointcloud2mesh_forward.1} parent=1 // pred_region
      _
    $region41: #{pointcloud2mesh_forward.1} parent=1 // pred_fallthru
      _
    // Predicated region
    $region42: #{pointcloud2mesh_forward.1} parent=1 // pred_check
      _
    $region43: #{pointcloud2mesh_forward.1} parent=1 // pred_check_branch
      %61 = sbr.rel (0) target = $region45
    $region44: #{pointcloud2mesh_forward.1} parent=1 // pred_region
      _
    $region45: #{pointcloud2mesh_forward.1} parent=1 // pred_fallthru
      _
    // Predicated region
    $region46: #{pointcloud2mesh_forward.1} parent=1 // pred_check
      _
    $region47: #{pointcloud2mesh_forward.1} parent=1 // pred_check_branch
      %63 = sbr.rel (0) target = $region49
    $region48: #{pointcloud2mesh_forward.1} parent=1 // pred_region
      _
    $region49: #{pointcloud2mesh_forward.1} parent=1 // pred_fallthru
      _
    // Predicated region
    $region50: #{pointcloud2mesh_forward.1} parent=1 // pred_check
      _
    $region51: #{pointcloud2mesh_forward.1} parent=1 // pred_check_branch
      %65 = sbr.rel (0) target = $region53
    $region52: #{pointcloud2mesh_forward.1} parent=1 // pred_region
      %s67 = ssub.s32 4096, 4096
      %68 = vsyncadd [#allocation6], %s67
      %s69 = sshll.u32 [#allocation7], 4
      %s70 = int_to_ptr.vmem [resolvable:$true] %s69
      %75 = dma.hbm_to_vmem [thread:$0]  %s12, 4096, %s70, [#allocation6], 128, 128, 8
    $region53: #{pointcloud2mesh_forward.1} parent=1 // pred_fallthru
      _
    // Predicated region
    $region54: #{pointcloud2mesh_forward.1} parent=1 // pred_check
      _
    $region55: #{pointcloud2mesh_forward.1} parent=1 // pred_check_branch
      %77 = sbr.rel (0) target = $region57
    $region56: #{pointcloud2mesh_forward.1} parent=1 // pred_region
      %78 = dma.done [#allocation4], 4096
    $region57: #{pointcloud2mesh_forward.1} parent=1 // pred_fallthru
      _
    // Predicated region
    $region58: #{pointcloud2mesh_forward.1} parent=1 // pred_check
      _
    $region59: #{pointcloud2mesh_forward.1} parent=1 // pred_check_branch
      %80 = sbr.rel (0) target = $region61
    $region60: #{pointcloud2mesh_forward.1} parent=1 // pred_region
      %81 = dma.done [#allocation6], 4096
    $region61: #{pointcloud2mesh_forward.1} parent=1 // pred_fallthru
      _
    // Predicated region
    $region62: #{pointcloud2mesh_forward.1} parent=1 // pred_check
      _
    $region63: #{pointcloud2mesh_forward.1} parent=1 // pred_check_branch
      %83 = sbr.rel (0) target = $region65
    $region64: #{pointcloud2mesh_forward.1} parent=1 // pred_region
      %84 = dma.done [#allocation6], 4096
    $region65: #{pointcloud2mesh_forward.1} parent=1 // pred_fallthru
      _
    %v86 = vld [vmem:[%s1] sm:$0xf]
    %v87 = vld [vmem:[%s1 + $0x4] sm:$0xf]
    %v88 = vld [vmem:[%s1 + $0x8] sm:$0xf]
    %v89 = vld [vmem:[%s1 + $0xc] sm:$0xf]
    %v90 = vld [vmem:[%s0] sm:$0x7]
    %v91 = vpack.c.bf16 %v90, %v90
    %v92 = vld [vmem:[%s2] sm:$0xff]
    %v93 = vld [vmem:[%s2 + $0x8] sm:$0xff]
    %v94 = vld [vmem:[%s2 + $0x10] sm:$0xff]
    %v95 = vld [vmem:[%s2 + $0x18] sm:$0xff]
    %97 = vset.pattern.permute.xlu0 0
    %98 = vperm.xlu0 %97, %v92
    %v99 = vpop.permute.xlu0 %98
    %102 = vset.pattern.permute.xlu0 0
    %103 = vperm.xlu0 %102, %v93
    %v104 = vpop.permute.xlu0 %103
    %107 = vset.pattern.permute.xlu0 0
    %108 = vperm.xlu0 %107, %v94
    %v109 = vpop.permute.xlu0 %108
    %112 = vset.pattern.permute.xlu0 0
    %113 = vperm.xlu0 %112, %v95
    %v114 = vpop.permute.xlu0 %113
    %v120 = vunpack.c.l.b16 %v86
    %v121 = vunpack.c.l.b16 %v87
    %v122 = vunpack.c.l.b16 %v88
    %v123 = vunpack.c.l.b16 %v89
    %v124 = vpack.c.b16 %v121, %v120
    %v125 = vpack.c.b16 %v123, %v122
    %vm126 = vcmask 23552
    %v128 = vsel %vm126, %v124, 0
    %v131 = vsel %vm126, %v125, 0
    %vm133 = vcmask 1040384
    %vm134 = vcmask 1041408
    %v135 = vsel %vm133, 4294967295, 65535
    %v136 = vsel %vm134, %v135, 0
    %v138 = vand.u32 %v91, %v136
    %140 = vmatprep.subr.bf16.mxu0 0
    %141 = vmatpush1.bf16.msra.mxu0 %v138
    %142 = vmatprep.subr.bf16.mxu0 0
    %143 = vmatpush1.bf16.msra.mxu0 0
    %144 = vmatprep.subr.bf16.mxu0 0
    %145 = vmatpush1.bf16.msra.mxu0 0
    %146 = vmatprep.subr.bf16.mxu0 0
    %147 = vmatpush1.bf16.msra.mxu0 0
    %148 = vmatprep.subr.bf16.mxu0 0
    %149 = vmatpush1.bf16.msra.mxu0 0
    %150 = vmatprep.subr.bf16.mxu0 0
    %151 = vmatpush1.bf16.msra.mxu0 0
    %152 = vmatprep.subr.bf16.mxu0 0
    %153 = vmatpush1.bf16.msra.mxu0 0
    %154 = vmatprep.subr.bf16.mxu0 0
    %155 = vmatpush1.bf16.msra.mxu0 0
    %156 = vmatprep.subr.bf16.mxu0 0
    %157 = vmatpush1.bf16.msra.mxu0 0
    %158 = vmatprep.subr.bf16.mxu0 0
    %159 = vmatpush1.bf16.msra.mxu0 0
    %160 = vmatprep.subr.bf16.mxu0 0
    %161 = vmatpush1.bf16.msra.mxu0 0
    %162 = vmatprep.subr.bf16.mxu0 0
    %163 = vmatpush1.bf16.msra.mxu0 0
    %164 = vmatprep.subr.bf16.mxu0 0
    %165 = vmatpush1.bf16.msra.mxu0 0
    %166 = vmatprep.subr.bf16.mxu0 0
    %167 = vmatpush1.bf16.msra.mxu0 0
    %168 = vmatprep.subr.bf16.mxu0 0
    %169 = vmatpush1.bf16.msra.mxu0 0
    %170 = vmatprep.subr.bf16.mxu0 0
    %171 = vmatpush1.bf16.msra.mxu0 0
    %172 = vmatprep.mubr.bf16.mxu0 0
    %173 = vmatmul.mubr.bf16.gmra.mrb[0].mxu0 %v128
    %v174 = vpop.f32.mrb[0].mxu0
    %v175 = vadd.f32 %v99, %v174
    %v176 = vpop.f32.mrb[0].mxu0
    %v177 = vpop.f32.mrb[0].mxu0
    %v178 = vadd.f32 %v104, %v177
    %v179 = vpop.f32.mrb[0].mxu0
    %180 = vmatprep.mubr.bf16.mxu0 0
    %181 = vmatmul.mubr.bf16.gmra.mrb[0].mxu0 %v131
    %v182 = vpop.f32.mrb[0].mxu0
    %v183 = vadd.f32 %v109, %v182
    %v184 = vpop.f32.mrb[0].mxu0
    %v185 = vpop.f32.mrb[0].mxu0
    %v186 = vadd.f32 %v114, %v185
    %v187 = vpop.f32.mrb[0].mxu0
    %188 = vdwg.mxu0
    %v189 = vmax.f32 %v175, 0.0
    %v190 = vmax.f32 %v178, 0.0
    %v191 = vmax.f32 %v183, 0.0
    %v192 = vmax.f32 %v186, 0.0
    %v193 = vpack.c.bf16 %v190, %v189
    %v194 = vpack.c.bf16 %v192, %v191
    %v195 = vld [vmem:[%s3] sm:$0xff]
    %v196 = vld [vmem:[%s3 + $0x8] sm:$0xff]
    %v197 = vld [vmem:[%s3 + $0x10] sm:$0xff]
    %v198 = vld [vmem:[%s3 + $0x18] sm:$0x77]
    %v203 = vunpack.c.l.b16 %v195
    %v204 = vunpack.c.h.b16 %v195
    %v205 = vunpack.c.l.b16 %v196
    %v206 = vunpack.c.h.b16 %v196
    %v207 = vunpack.c.l.b16 %v197
    %v208 = vunpack.c.h.b16 %v197
    %v209 = vunpack.c.l.b16 %v198
    %v210 = vunpack.c.h.b16 %v198
    %v211 = vpack.c.b16 %v205, %v203
    %v212 = vpack.c.b16 %v206, %v204
    %v213 = vpack.c.b16 %v209, %v207
    %v214 = vpack.c.b16 %v210, %v208
    %vm217 = vcmask 244736
    %v219 = vsel %vm217, %v193, 0
    %v222 = vsel %vm217, %v194, 0
    %vm224 = vcmask 1046528
    %v226 = vsel %vm224, %v213, 0
    %v229 = vsel %vm224, %v214, 0
    %231 = vmatprep.subr.bf16.mxu0 %v212
    %232 = vmatpush1.bf16.msra.mxu0 %v211
    %233 = vmatprep.subr.bf16.mxu0 %v229
    %234 = vmatpush1.bf16.msra.mxu0 %v226
    %235 = vmatprep.subr.bf16.mxu0 0
    %236 = vmatpush1.bf16.msra.mxu0 0
    %237 = vmatprep.subr.bf16.mxu0 0
    %238 = vmatpush1.bf16.msra.mxu0 0
    %239 = vmatprep.subr.bf16.mxu0 0
    %240 = vmatpush1.bf16.msra.mxu0 0
    %241 = vmatprep.subr.bf16.mxu0 0
    %242 = vmatpush1.bf16.msra.mxu0 0
    %243 = vmatprep.subr.bf16.mxu0 0
    %244 = vmatpush1.bf16.msra.mxu0 0
    %245 = vmatprep.subr.bf16.mxu0 0
    %246 = vmatpush1.bf16.msra.mxu0 0
    %247 = vmatprep.subr.bf16.mxu0 0
    %248 = vmatpush1.bf16.msra.mxu0 0
    %249 = vmatprep.subr.bf16.mxu0 0
    %250 = vmatpush1.bf16.msra.mxu0 0
    %251 = vmatprep.subr.bf16.mxu0 0
    %252 = vmatpush1.bf16.msra.mxu0 0
    %253 = vmatprep.subr.bf16.mxu0 0
    %254 = vmatpush1.bf16.msra.mxu0 0
    %255 = vmatprep.subr.bf16.mxu0 0
    %256 = vmatpush1.bf16.msra.mxu0 0
    %257 = vmatprep.subr.bf16.mxu0 0
    %258 = vmatpush1.bf16.msra.mxu0 0
    %259 = vmatprep.subr.bf16.mxu0 0
    %260 = vmatpush1.bf16.msra.mxu0 0
    %261 = vmatprep.subr.bf16.mxu0 0
    %262 = vmatpush1.bf16.msra.mxu0 0
    %263 = vmatprep.mubr.bf16.mxu0 0
    %264 = vmatmul.mubr.bf16.gmra.mrb[0].mxu0 %v219
    %v265 = vpop.f32.mrb[0].mxu0
    %v266 = vadd.f32 0.0, %v265
    %v267 = vpop.f32.mrb[0].mxu0
    %v268 = vadd.f32 0.0, %v267
    %v269 = vpop.f32.mrb[0].mxu0
    %v270 = vadd.f32 0.0, %v269
    %v271 = vpop.f32.mrb[0].mxu0
    %v272 = vadd.f32 0.0, %v271
    %273 = vmatprep.mubr.bf16.mxu0 0
    %274 = vmatmul.mubr.bf16.gmra.mrb[0].mxu0 %v222
    %v275 = vpop.f32.mrb[0].mxu0
    %v276 = vadd.f32 0.0, %v275
    %v277 = vpop.f32.mrb[0].mxu0
    %v278 = vadd.f32 0.0, %v277
    %v279 = vpop.f32.mrb[0].mxu0
    %v280 = vadd.f32 0.0, %v279
    %v281 = vpop.f32.mrb[0].mxu0
    %v282 = vadd.f32 0.0, %v281
    %283 = vdwg.mxu0
    %v284 = vpack.c.bf16 %v270, %v266
    %v285 = vpack.c.bf16 %v272, %v268
    %v286 = vpack.c.bf16 %v280, %v276
    %v287 = vpack.c.bf16 %v282, %v278
    %v288 = vld [vmem:[#allocation3] sm:$0xff]
    %v289 = vld [vmem:[#allocation3 + $0x8] sm:$0xff]
    %v290 = vld [vmem:[#allocation3 + $0x10] sm:$0xff]
    %v291 = vld [vmem:[#allocation3 + $0x18] sm:$0xff]
    %v292 = vld [vmem:[#allocation3 + $0x20] sm:$0xff]
    %v293 = vld [vmem:[#allocation3 + $0x28] sm:$0xff]
    %v294 = vld [vmem:[#allocation3 + $0x30] sm:$0xff]
    %v295 = vld [vmem:[#allocation3 + $0x38] sm:$0xff]
    %v296 = vld [vmem:[#allocation3 + $0x40] sm:$0xff]
    %v297 = vld [vmem:[#allocation3 + $0x48] sm:$0xff]
    %v298 = vld [vmem:[#allocation3 + $0x50] sm:$0xff]
    %v299 = vld [vmem:[#allocation3 + $0x58] sm:$0xff]
    %v300 = vld [vmem:[#allocation3 + $0x60] sm:$0xff]
    %v301 = vld [vmem:[#allocation3 + $0x68] sm:$0xff]
    %v302 = vld [vmem:[#allocation3 + $0x70] sm:$0xff]
    %v303 = vld [vmem:[#allocation3 + $0x78] sm:$0xff]
    %v304 = vld [vmem:[#allocation3 + $0x80] sm:$0xff]
    %v305 = vld [vmem:[#allocation3 + $0x88] sm:$0xff]
    %v306 = vld [vmem:[#allocation3 + $0x90] sm:$0xff]
    %v307 = vld [vmem:[#allocation3 + $0x98] sm:$0xff]
    %v308 = vld [vmem:[#allocation3 + $0xa0] sm:$0xff]
    %v309 = vld [vmem:[#allocation3 + $0xa8] sm:$0xff]
    %v310 = vld [vmem:[#allocation3 + $0xb0] sm:$0xff]
    %v311 = vld [vmem:[#allocation3 + $0xb8] sm:$0xff]
    %v312 = vld [vmem:[#allocation3 + $0xc0] sm:$0xff]
    %v313 = vld [vmem:[#allocation3 + $0xc8] sm:$0xff]
    %v314 = vld [vmem:[#allocation3 + $0xd0] sm:$0xff]
    %v315 = vld [vmem:[#allocation3 + $0xd8] sm:$0xff]
    %v316 = vld [vmem:[#allocation3 + $0xe0] sm:$0xff]
    %v317 = vld [vmem:[#allocation3 + $0xe8] sm:$0xff]
    %v318 = vld [vmem:[#allocation3 + $0xf0] sm:$0xff]
    %v319 = vld [vmem:[#allocation3 + $0xf8] sm:$0xff]
    %v352 = vunpack.c.l.b16 %v288
    %v353 = vunpack.c.h.b16 %v288
    %v354 = vunpack.c.l.b16 %v289
    %v355 = vunpack.c.h.b16 %v289
    %v356 = vunpack.c.l.b16 %v290
    %v357 = vunpack.c.h.b16 %v290
    %v358 = vunpack.c.l.b16 %v291
    %v359 = vunpack.c.h.b16 %v291
    %v360 = vunpack.c.l.b16 %v292
    %v361 = vunpack.c.h.b16 %v292
    %v362 = vunpack.c.l.b16 %v293
    %v363 = vunpack.c.h.b16 %v293
    %v364 = vunpack.c.l.b16 %v294
    %v365 = vunpack.c.h.b16 %v294
    %v366 = vunpack.c.l.b16 %v295
    %v367 = vunpack.c.h.b16 %v295
    %v368 = vunpack.c.l.b16 %v296
    %v369 = vunpack.c.h.b16 %v296
    %v370 = vunpack.c.l.b16 %v297
    %v371 = vunpack.c.h.b16 %v297
    %v372 = vunpack.c.l.b16 %v298
    %v373 = vunpack.c.h.b16 %v298
    %v374 = vunpack.c.l.b16 %v299
    %v375 = vunpack.c.h.b16 %v299
    %v376 = vunpack.c.l.b16 %v300
    %v377 = vunpack.c.h.b16 %v300
    %v378 = vunpack.c.l.b16 %v301
    %v379 = vunpack.c.h.b16 %v301
    %v380 = vunpack.c.l.b16 %v302
    %v381 = vunpack.c.h.b16 %v302
    %v382 = vunpack.c.l.b16 %v303
    %v383 = vunpack.c.h.b16 %v303
    %v384 = vunpack.c.l.b16 %v304
    %v385 = vunpack.c.h.b16 %v304
    %v386 = vunpack.c.l.b16 %v305
    %v387 = vunpack.c.h.b16 %v305
    %v388 = vunpack.c.l.b16 %v306
    %v389 = vunpack.c.h.b16 %v306
    %v390 = vunpack.c.l.b16 %v307
    %v391 = vunpack.c.h.b16 %v307
    %v392 = vunpack.c.l.b16 %v308
    %v393 = vunpack.c.h.b16 %v308
    %v394 = vunpack.c.l.b16 %v309
    %v395 = vunpack.c.h.b16 %v309
    %v396 = vunpack.c.l.b16 %v310
    %v397 = vunpack.c.h.b16 %v310
    %v398 = vunpack.c.l.b16 %v311
    %v399 = vunpack.c.h.b16 %v311
    %v400 = vunpack.c.l.b16 %v312
    %v401 = vunpack.c.h.b16 %v312
    %v402 = vunpack.c.l.b16 %v313
    %v403 = vunpack.c.h.b16 %v313
    %v404 = vunpack.c.l.b16 %v314
    %v405 = vunpack.c.h.b16 %v314
    %v406 = vunpack.c.l.b16 %v315
    %v407 = vunpack.c.h.b16 %v315
    %v408 = vunpack.c.l.b16 %v316
    %v409 = vunpack.c.h.b16 %v316
    %v410 = vunpack.c.l.b16 %v317
    %v411 = vunpack.c.h.b16 %v317
    %v412 = vunpack.c.l.b16 %v318
    %v413 = vunpack.c.h.b16 %v318
    %v414 = vunpack.c.l.b16 %v319
    %v415 = vunpack.c.h.b16 %v319
    %v416 = vpack.c.b16 %v354, %v352
    %v417 = vpack.c.b16 %v355, %v353
    %v418 = vpack.c.b16 %v358, %v356
    %v419 = vpack.c.b16 %v359, %v357
    %v420 = vpack.c.b16 %v362, %v360
    %v421 = vpack.c.b16 %v363, %v361
    %v422 = vpack.c.b16 %v366, %v364
    %v423 = vpack.c.b16 %v367, %v365
    %v424 = vpack.c.b16 %v370, %v368
    %v425 = vpack.c.b16 %v371, %v369
    %v426 = vpack.c.b16 %v374, %v372
    %v427 = vpack.c.b16 %v375, %v373
    %v428 = vpack.c.b16 %v378, %v376
    %v429 = vpack.c.b16 %v379, %v377
    %v430 = vpack.c.b16 %v382, %v380
    %v431 = vpack.c.b16 %v383, %v381
    %v432 = vpack.c.b16 %v386, %v384
    %v433 = vpack.c.b16 %v387, %v385
    %v434 = vpack.c.b16 %v390, %v388
    %v435 = vpack.c.b16 %v391, %v389
    %v436 = vpack.c.b16 %v394, %v392
    %v437 = vpack.c.b16 %v395, %v393
    %v438 = vpack.c.b16 %v398, %v396
    %v439 = vpack.c.b16 %v399, %v397
    %v440 = vpack.c.b16 %v402, %v400
    %v441 = vpack.c.b16 %v403, %v401
    %v442 = vpack.c.b16 %v406, %v404
    %v443 = vpack.c.b16 %v407, %v405
    %v444 = vpack.c.b16 %v410, %v408
    %v445 = vpack.c.b16 %v411, %v409
    %v446 = vpack.c.b16 %v414, %v412
    %v447 = vpack.c.b16 %v415, %v413
    %480 = vmatprep.subr.bf16.mxu0 %v417
    %481 = vmatpush1.bf16.msra.mxu0 %v416
    %482 = vmatprep.subr.bf16.mxu0 %v419
    %483 = vmatpush1.bf16.msra.mxu0 %v418
    %484 = vmatprep.subr.bf16.mxu0 %v421
    %485 = vmatpush1.bf16.msra.mxu0 %v420
    %486 = vmatprep.subr.bf16.mxu0 %v423
    %487 = vmatpush1.bf16.msra.mxu0 %v422
    %488 = vmatprep.subr.bf16.mxu0 %v425
    %489 = vmatpush1.bf16.msra.mxu0 %v424
    %490 = vmatprep.subr.bf16.mxu0 %v427
    %491 = vmatpush1.bf16.msra.mxu0 %v426
    %492 = vmatprep.subr.bf16.mxu0 %v429
    %493 = vmatpush1.bf16.msra.mxu0 %v428
    %494 = vmatprep.subr.bf16.mxu0 %v431
    %495 = vmatpush1.bf16.msra.mxu0 %v430
    %496 = vmatprep.subr.bf16.mxu0 %v433
    %497 = vmatpush1.bf16.msra.mxu0 %v432
    %498 = vmatprep.subr.bf16.mxu0 %v435
    %499 = vmatpush1.bf16.msra.mxu0 %v434
    %500 = vmatprep.subr.bf16.mxu0 %v437
    %501 = vmatpush1.bf16.msra.mxu0 %v436
    %502 = vmatprep.subr.bf16.mxu0 %v439
    %503 = vmatpush1.bf16.msra.mxu0 %v438
    %504 = vmatprep.subr.bf16.mxu0 %v441
    %505 = vmatpush1.bf16.msra.mxu0 %v440
    %506 = vmatprep.subr.bf16.mxu0 %v443
    %507 = vmatpush1.bf16.msra.mxu0 %v442
    %508 = vmatprep.subr.bf16.mxu0 %v445
    %509 = vmatpush1.bf16.msra.mxu0 %v444
    %510 = vmatprep.subr.bf16.mxu0 %v447
    %511 = vmatpush1.bf16.msra.mxu0 %v446
    %512 = vmatprep.mubr.bf16.mxu0 %v285
    %513 = vmatmul.mubr.bf16.gmra.mrb[0].mxu0 %v284
    %v514 = vpop.f32.mrb[0].mxu0
    %v515 = vadd.f32 0.0, %v514
    %v516 = vpop.f32.mrb[0].mxu0
    %v517 = vadd.f32 0.0, %v516
    %v518 = vpop.f32.mrb[0].mxu0
    %v519 = vadd.f32 0.0, %v518
    %v520 = vpop.f32.mrb[0].mxu0
    %v521 = vadd.f32 0.0, %v520
    %522 = vmatprep.mubr.bf16.mxu0 %v287
    %523 = vmatmul.mubr.bf16.gmra.mrb[0].mxu0 %v286
    %v524 = vpop.f32.mrb[0].mxu0
    %v525 = vadd.f32 0.0, %v524
    %v526 = vpop.f32.mrb[0].mxu0
    %v527 = vadd.f32 0.0, %v526
    %v528 = vpop.f32.mrb[0].mxu0
    %v529 = vadd.f32 0.0, %v528
    %v530 = vpop.f32.mrb[0].mxu0
    %v531 = vadd.f32 0.0, %v530
    %532 = vdwg.mxu0
    %v533 = vld [vmem:[#allocation5] sm:$0xff]
    %v534 = vld [vmem:[#allocation5 + $0x8] sm:$0xff]
    %v535 = vld [vmem:[#allocation5 + $0x10] sm:$0xff]
    %v536 = vld [vmem:[#allocation5 + $0x18] sm:$0xff]
    %v537 = vld [vmem:[#allocation5 + $0x20] sm:$0xff]
    %v538 = vld [vmem:[#allocation5 + $0x28] sm:$0xff]
    %v539 = vld [vmem:[#allocation5 + $0x30] sm:$0xff]
    %v540 = vld [vmem:[#allocation5 + $0x38] sm:$0xff]
    %v541 = vld [vmem:[#allocation5 + $0x40] sm:$0xff]
    %v542 = vld [vmem:[#allocation5 + $0x48] sm:$0xff]
    %v543 = vld [vmem:[#allocation5 + $0x50] sm:$0xff]
    %v544 = vld [vmem:[#allocation5 + $0x58] sm:$0xff]
    %v545 = vld [vmem:[#allocation5 + $0x60] sm:$0xff]
    %v546 = vld [vmem:[#allocation5 + $0x68] sm:$0xff]
    %v547 = vld [vmem:[#allocation5 + $0x70] sm:$0xff]
    %v548 = vld [vmem:[#allocation5 + $0x78] sm:$0xff]
    %v549 = vld [vmem:[#allocation5 + $0x80] sm:$0xff]
    %v550 = vld [vmem:[#allocation5 + $0x88] sm:$0xff]
    %v551 = vld [vmem:[#allocation5 + $0x90] sm:$0xff]
    %v552 = vld [vmem:[#allocation5 + $0x98] sm:$0xff]
    %v553 = vld [vmem:[#allocation5 + $0xa0] sm:$0xff]
    %v554 = vld [vmem:[#allocation5 + $0xa8] sm:$0xff]
    %v555 = vld [vmem:[#allocation5 + $0xb0] sm:$0xff]
    %v556 = vld [vmem:[#allocation5 + $0xb8] sm:$0xff]
    %v557 = vld [vmem:[#allocation5 + $0xc0] sm:$0xff]
    %v558 = vld [vmem:[#allocation5 + $0xc8] sm:$0xff]
    %v559 = vld [vmem:[#allocation5 + $0xd0] sm:$0xff]
    %v560 = vld [vmem:[#allocation5 + $0xd8] sm:$0xff]
    %v561 = vld [vmem:[#allocation5 + $0xe0] sm:$0xff]
    %v562 = vld [vmem:[#allocation5 + $0xe8] sm:$0xff]
    %v563 = vld [vmem:[#allocation5 + $0xf0] sm:$0xff]
    %v564 = vld [vmem:[#allocation5 + $0xf8] sm:$0xff]
    %v597 = vunpack.c.l.b16 %v533
    %v598 = vunpack.c.h.b16 %v533
    %v599 = vunpack.c.l.b16 %v534
    %v600 = vunpack.c.h.b16 %v534
    %v601 = vunpack.c.l.b16 %v535
    %v602 = vunpack.c.h.b16 %v535
    %v603 = vunpack.c.l.b16 %v536
    %v604 = vunpack.c.h.b16 %v536
    %v605 = vunpack.c.l.b16 %v537
    %v606 = vunpack.c.h.b16 %v537
    %v607 = vunpack.c.l.b16 %v538
    %v608 = vunpack.c.h.b16 %v538
    %v609 = vunpack.c.l.b16 %v539
    %v610 = vunpack.c.h.b16 %v539
    %v611 = vunpack.c.l.b16 %v540
    %v612 = vunpack.c.h.b16 %v540
    %v613 = vunpack.c.l.b16 %v541
    %v614 = vunpack.c.h.b16 %v541
    %v615 = vunpack.c.l.b16 %v542
    %v616 = vunpack.c.h.b16 %v542
    %v617 = vunpack.c.l.b16 %v543
    %v618 = vunpack.c.h.b16 %v543
    %v619 = vunpack.c.l.b16 %v544
    %v620 = vunpack.c.h.b16 %v544
    %v621 = vunpack.c.l.b16 %v545
    %v622 = vunpack.c.h.b16 %v545
    %v623 = vunpack.c.l.b16 %v546
    %v624 = vunpack.c.h.b16 %v546
    %v625 = vunpack.c.l.b16 %v547
    %v626 = vunpack.c.h.b16 %v547
    %v627 = vunpack.c.l.b16 %v548
    %v628 = vunpack.c.h.b16 %v548
    %v629 = vunpack.c.l.b16 %v549
    %v630 = vunpack.c.h.b16 %v549
    %v631 = vunpack.c.l.b16 %v550
    %v632 = vunpack.c.h.b16 %v550
    %v633 = vunpack.c.l.b16 %v551
    %v634 = vunpack.c.h.b16 %v551
    %v635 = vunpack.c.l.b16 %v552
    %v636 = vunpack.c.h.b16 %v552
    %v637 = vunpack.c.l.b16 %v553
    %v638 = vunpack.c.h.b16 %v553
    %v639 = vunpack.c.l.b16 %v554
    %v640 = vunpack.c.h.b16 %v554
    %v641 = vunpack.c.l.b16 %v555
    %v642 = vunpack.c.h.b16 %v555
    %v643 = vunpack.c.l.b16 %v556
    %v644 = vunpack.c.h.b16 %v556
    %v645 = vunpack.c.l.b16 %v557
    %v646 = vunpack.c.h.b16 %v557
    %v647 = vunpack.c.l.b16 %v558
    %v648 = vunpack.c.h.b16 %v558
    %v649 = vunpack.c.l.b16 %v559
    %v650 = vunpack.c.h.b16 %v559
    %v651 = vunpack.c.l.b16 %v560
    %v652 = vunpack.c.h.b16 %v560
    %v653 = vunpack.c.l.b16 %v561
    %v654 = vunpack.c.h.b16 %v561
    %v655 = vunpack.c.l.b16 %v562
    %v656 = vunpack.c.h.b16 %v562
    %v657 = vunpack.c.l.b16 %v563
    %v658 = vunpack.c.h.b16 %v563
    %v659 = vunpack.c.l.b16 %v564
    %v660 = vunpack.c.h.b16 %v564
    %v661 = vpack.c.b16 %v599, %v597
    %v662 = vpack.c.b16 %v600, %v598
    %v663 = vpack.c.b16 %v603, %v601
    %v664 = vpack.c.b16 %v604, %v602
    %v665 = vpack.c.b16 %v607, %v605
    %v666 = vpack.c.b16 %v608, %v606
    %v667 = vpack.c.b16 %v611, %v609
    %v668 = vpack.c.b16 %v612, %v610
    %v669 = vpack.c.b16 %v615, %v613
    %v670 = vpack.c.b16 %v616, %v614
    %v671 = vpack.c.b16 %v619, %v617
    %v672 = vpack.c.b16 %v620, %v618
    %v673 = vpack.c.b16 %v623, %v621
    %v674 = vpack.c.b16 %v624, %v622
    %v675 = vpack.c.b16 %v627, %v625
    %v676 = vpack.c.b16 %v628, %v626
    %v677 = vpack.c.b16 %v631, %v629
    %v678 = vpack.c.b16 %v632, %v630
    %v679 = vpack.c.b16 %v635, %v633
    %v680 = vpack.c.b16 %v636, %v634
    %v681 = vpack.c.b16 %v639, %v637
    %v682 = vpack.c.b16 %v640, %v638
    %v683 = vpack.c.b16 %v643, %v641
    %v684 = vpack.c.b16 %v644, %v642
    %v685 = vpack.c.b16 %v647, %v645
    %v686 = vpack.c.b16 %v648, %v646
    %v687 = vpack.c.b16 %v651, %v649
    %v688 = vpack.c.b16 %v652, %v650
    %v689 = vpack.c.b16 %v655, %v653
    %v690 = vpack.c.b16 %v656, %v654
    %v691 = vpack.c.b16 %v659, %v657
    %v692 = vpack.c.b16 %v660, %v658
    %725 = vmatprep.subr.bf16.mxu0 %v662
    %726 = vmatpush1.bf16.msra.mxu0 %v661
    %727 = vmatprep.subr.bf16.mxu0 %v664
    %728 = vmatpush1.bf16.msra.mxu0 %v663
    %729 = vmatprep.subr.bf16.mxu0 %v666
    %730 = vmatpush1.bf16.msra.mxu0 %v665
    %731 = vmatprep.subr.bf16.mxu0 %v668
    %732 = vmatpush1.bf16.msra.mxu0 %v667
    %733 = vmatprep.subr.bf16.mxu0 %v670
    %734 = vmatpush1.bf16.msra.mxu0 %v669
    %735 = vmatprep.subr.bf16.mxu0 %v672
    %736 = vmatpush1.bf16.msra.mxu0 %v671
    %737 = vmatprep.subr.bf16.mxu0 %v674
    %738 = vmatpush1.bf16.msra.mxu0 %v673
    %739 = vmatprep.subr.bf16.mxu0 %v676
    %740 = vmatpush1.bf16.msra.mxu0 %v675
    %741 = vmatprep.subr.bf16.mxu0 %v678
    %742 = vmatpush1.bf16.msra.mxu0 %v677
    %743 = vmatprep.subr.bf16.mxu0 %v680
    %744 = vmatpush1.bf16.msra.mxu0 %v679
    %745 = vmatprep.subr.bf16.mxu0 %v682
    %746 = vmatpush1.bf16.msra.mxu0 %v681
    %747 = vmatprep.subr.bf16.mxu0 %v684
    %748 = vmatpush1.bf16.msra.mxu0 %v683
    %749 = vmatprep.subr.bf16.mxu0 %v686
    %750 = vmatpush1.bf16.msra.mxu0 %v685
    %751 = vmatprep.subr.bf16.mxu0 %v688
    %752 = vmatpush1.bf16.msra.mxu0 %v687
    %753 = vmatprep.subr.bf16.mxu0 %v690
    %754 = vmatpush1.bf16.msra.mxu0 %v689
    %755 = vmatprep.subr.bf16.mxu0 %v692
    %756 = vmatpush1.bf16.msra.mxu0 %v691
    %757 = vmatprep.mubr.bf16.mxu0 %v285
    %758 = vmatmul.mubr.bf16.gmra.mrb[0].mxu0 %v284
    %v759 = vpop.f32.mrb[0].mxu0
    %v760 = vadd.f32 0.0, %v759
    %v761 = vpop.f32.mrb[0].mxu0
    %v762 = vadd.f32 0.0, %v761
    %v763 = vpop.f32.mrb[0].mxu0
    %v764 = vadd.f32 0.0, %v763
    %v765 = vpop.f32.mrb[0].mxu0
    %v766 = vadd.f32 0.0, %v765
    %767 = vmatprep.mubr.bf16.mxu0 %v287
    %768 = vmatmul.mubr.bf16.gmra.mrb[0].mxu0 %v286
    %v769 = vpop.f32.mrb[0].mxu0
    %v770 = vadd.f32 0.0, %v769
    %v771 = vpop.f32.mrb[0].mxu0
    %v772 = vadd.f32 0.0, %v771
    %v773 = vpop.f32.mrb[0].mxu0
    %v774 = vadd.f32 0.0, %v773
    %v775 = vpop.f32.mrb[0].mxu0
    %v776 = vadd.f32 0.0, %v775
    %777 = vdwg.mxu0
    %v778 = vmul.f32 %v760, 2.0
    %v779 = vmul.f32 %v762, 2.0
    %v780 = vmul.f32 %v764, 2.0
    %v781 = vmul.f32 %v766, 2.0
    %v782 = vmul.f32 %v770, 2.0
    %v783 = vmul.f32 %v772, 2.0
    %v784 = vmul.f32 %v774, 2.0
    %v785 = vmul.f32 %v776, 2.0
    %v786 = vsub.f32 %v778, %v266
    %v787 = vsub.f32 %v779, %v268
    %v788 = vsub.f32 %v780, %v270
    %v789 = vsub.f32 %v781, %v272
    %v790 = vsub.f32 %v782, %v276
    %v791 = vsub.f32 %v783, %v278
    %v792 = vsub.f32 %v784, %v280
    %v793 = vsub.f32 %v785, %v282
    %794 = vst [vmem:[#allocation2] sm:$0xff] %v284
    %795 = vst [vmem:[#allocation2 + $0x8] sm:$0xff] %v285
    %796 = vst [vmem:[#allocation2 + $0x10] sm:$0xff] %v286
    %797 = vst [vmem:[#allocation2 + $0x18] sm:$0xff] %v287
    %v798 = vpack.c.bf16 %v519, %v515
    %v799 = vpack.c.bf16 %v521, %v517
    %v800 = vpack.c.bf16 %v529, %v525
    %v801 = vpack.c.bf16 %v531, %v527
    %802 = vst [vmem:[#allocation2 + $0x20] sm:$0xff] %v798
    %803 = vst [vmem:[#allocation2 + $0x28] sm:$0xff] %v799
    %804 = vst [vmem:[#allocation2 + $0x30] sm:$0xff] %v800
    %805 = vst [vmem:[#allocation2 + $0x38] sm:$0xff] %v801
    %v806 = vpack.c.bf16 %v788, %v786
    %v807 = vpack.c.bf16 %v789, %v787
    %v808 = vpack.c.bf16 %v792, %v790
    %v809 = vpack.c.bf16 %v793, %v791
    %810 = vst [vmem:[#allocation2 + $0x40] sm:$0xff] %v806
    %811 = vst [vmem:[#allocation2 + $0x48] sm:$0xff] %v807
    %812 = vst [vmem:[#allocation2 + $0x50] sm:$0xff] %v808
    %813 = vst [vmem:[#allocation2 + $0x58] sm:$0xff] %v809
    %v814 = vld [vmem:[%s6] sm:$0xf]
    %v815 = vld [vmem:[%s6 + $0x4] sm:$0xf]
    %v816 = vld [vmem:[%s6 + $0x8] sm:$0xf]
    %v817 = vld [vmem:[%s6 + $0xc] sm:$0xf]
    %v818 = vld [vmem:[#allocation2] sm:$0xff]
    %v819 = vld [vmem:[#allocation2 + $0x8] sm:$0xff]
    %v820 = vld [vmem:[#allocation2 + $0x10] sm:$0xff]
    %v821 = vld [vmem:[#allocation2 + $0x18] sm:$0xff]
    %v822 = vld [vmem:[#allocation2 + $0x20] sm:$0xff]
    %v823 = vld [vmem:[#allocation2 + $0x28] sm:$0xff]
    %v824 = vld [vmem:[#allocation2 + $0x30] sm:$0xff]
    %v825 = vld [vmem:[#allocation2 + $0x38] sm:$0xff]
    %v826 = vld [vmem:[#allocation2 + $0x40] sm:$0xff]
    %v827 = vld [vmem:[#allocation2 + $0x48] sm:$0xff]
    %v828 = vld [vmem:[#allocation2 + $0x50] sm:$0xff]
    %v829 = vld [vmem:[#allocation2 + $0x58] sm:$0xff]
    %v830 = vld [vmem:[%s7] sm:$0xff]
    %v831 = vld [vmem:[%s7 + $0x8] sm:$0xff]
    %v832 = vld [vmem:[%s7 + $0x10] sm:$0xff]
    %v833 = vld [vmem:[%s7 + $0x18] sm:$0xff]
    %835 = vset.pattern.permute.xlu0 0
    %836 = vperm.xlu0 %835, %v830
    %v837 = vpop.permute.xlu0 %836
    %840 = vset.pattern.permute.xlu0 0
    %841 = vperm.xlu0 %840, %v831
    %v842 = vpop.permute.xlu0 %841
    %845 = vset.pattern.permute.xlu0 0
    %846 = vperm.xlu0 %845, %v832
    %v847 = vpop.permute.xlu0 %846
    %850 = vset.pattern.permute.xlu0 0
    %851 = vperm.xlu0 %850, %v833
    %v852 = vpop.permute.xlu0 %851
    %v858 = vunpack.c.l.b16 %v814
    %v859 = vunpack.c.l.b16 %v815
    %v860 = vunpack.c.l.b16 %v816
    %v861 = vunpack.c.l.b16 %v817
    %v862 = vpack.c.b16 %v859, %v858
    %v863 = vpack.c.b16 %v861, %v860
    %vm864 = vcmask 785408
    %v866 = vsel %vm864, %v862, 0
    %v869 = vsel %vm864, %v863, 0
    %871 = vmatprep.subr.bf16.mxu0 %v819
    %872 = vmatpush1.bf16.msra.mxu0 %v818
    %873 = vmatprep.subr.bf16.mxu0 %v821
    %874 = vmatpush1.bf16.msra.mxu0 %v820
    %875 = vmatprep.subr.bf16.mxu0 %v823
    %876 = vmatpush1.bf16.msra.mxu0 %v822
    %877 = vmatprep.subr.bf16.mxu0 %v825
    %878 = vmatpush1.bf16.msra.mxu0 %v824
    %879 = vmatprep.subr.bf16.mxu0 %v827
    %880 = vmatpush1.bf16.msra.mxu0 %v826
    %881 = vmatprep.subr.bf16.mxu0 %v829
    %882 = vmatpush1.bf16.msra.mxu0 %v828
    %883 = vmatprep.subr.bf16.mxu0 0
    %884 = vmatpush1.bf16.msra.mxu0 0
    %885 = vmatprep.subr.bf16.mxu0 0
    %886 = vmatpush1.bf16.msra.mxu0 0
    %887 = vmatprep.subr.bf16.mxu0 0
    %888 = vmatpush1.bf16.msra.mxu0 0
    %889 = vmatprep.subr.bf16.mxu0 0
    %890 = vmatpush1.bf16.msra.mxu0 0
    %891 = vmatprep.subr.bf16.mxu0 0
    %892 = vmatpush1.bf16.msra.mxu0 0
    %893 = vmatprep.subr.bf16.mxu0 0
    %894 = vmatpush1.bf16.msra.mxu0 0
    %895 = vmatprep.subr.bf16.mxu0 0
    %896 = vmatpush1.bf16.msra.mxu0 0
    %897 = vmatprep.subr.bf16.mxu0 0
    %898 = vmatpush1.bf16.msra.mxu0 0
    %899 = vmatprep.subr.bf16.mxu0 0
    %900 = vmatpush1.bf16.msra.mxu0 0
    %901 = vmatprep.subr.bf16.mxu0 0
    %902 = vmatpush1.bf16.msra.mxu0 0
    %903 = vmatprep.mubr.bf16.mxu0 0
    %904 = vmatmul.mubr.bf16.gmra.mrb[0].mxu0 %v866
    %v905 = vpop.f32.mrb[0].mxu0
    %v906 = vadd.f32 %v837, %v905
    %v907 = vpop.f32.mrb[0].mxu0
    %v908 = vadd.f32 %v837, %v907
    %v909 = vpop.f32.mrb[0].mxu0
    %v910 = vadd.f32 %v842, %v909
    %v911 = vpop.f32.mrb[0].mxu0
    %v912 = vadd.f32 %v842, %v911
    %913 = vmatprep.mubr.bf16.mxu0 0
    %914 = vmatmul.mubr.bf16.gmra.mrb[0].mxu0 %v869
    %v915 = vpop.f32.mrb[0].mxu0
    %v916 = vadd.f32 %v847, %v915
    %v917 = vpop.f32.mrb[0].mxu0
    %v918 = vadd.f32 %v847, %v917
    %v919 = vpop.f32.mrb[0].mxu0
    %v920 = vadd.f32 %v852, %v919
    %v921 = vpop.f32.mrb[0].mxu0
    %v922 = vadd.f32 %v852, %v921
    %923 = vdwg.mxu0
    %v924 = vmax.f32 %v906, 0.0
    %v925 = vmax.f32 %v908, 0.0
    %v926 = vmax.f32 %v910, 0.0
    %v927 = vmax.f32 %v912, 0.0
    %v928 = vmax.f32 %v916, 0.0
    %v929 = vmax.f32 %v918, 0.0
    %v930 = vmax.f32 %v920, 0.0
    %v931 = vmax.f32 %v922, 0.0
    %v932 = vpack.c.bf16 %v926, %v924
    %v933 = vpack.c.bf16 %v927, %v925
    %v934 = vpack.c.bf16 %v930, %v928
    %v935 = vpack.c.bf16 %v931, %v929
    %v936 = vld [vmem:[#allocation3] sm:$0xff]
    %v937 = vld [vmem:[#allocation3 + $0x8] sm:$0xff]
    %v938 = vld [vmem:[#allocation3 + $0x10] sm:$0xff]
    %v939 = vld [vmem:[#allocation3 + $0x18] sm:$0xff]
    %v940 = vld [vmem:[#allocation3 + $0x20] sm:$0xff]
    %v941 = vld [vmem:[#allocation3 + $0x28] sm:$0xff]
    %v942 = vld [vmem:[#allocation3 + $0x30] sm:$0xff]
    %v943 = vld [vmem:[#allocation3 + $0x38] sm:$0xff]
    %v944 = vld [vmem:[#allocation3 + $0x40] sm:$0xff]
    %v945 = vld [vmem:[#allocation3 + $0x48] sm:$0xff]
    %v946 = vld [vmem:[#allocation3 + $0x50] sm:$0xff]
    %v947 = vld [vmem:[#allocation3 + $0x58] sm:$0xff]
    %v948 = vld [vmem:[#allocation3 + $0x60] sm:$0xff]
    %v949 = vld [vmem:[#allocation3 + $0x68] sm:$0xff]
    %v950 = vld [vmem:[#allocation3 + $0x70] sm:$0xff]
    %v951 = vld [vmem:[#allocation3 + $0x78] sm:$0xff]
    %v952 = vld [vmem:[#allocation3 + $0x80] sm:$0xff]
    %v953 = vld [vmem:[#allocation3 + $0x88] sm:$0xff]
    %v954 = vld [vmem:[#allocation3 + $0x90] sm:$0xff]
    %v955 = vld [vmem:[#allocation3 + $0x98] sm:$0xff]
    %v956 = vld [vmem:[#allocation3 + $0xa0] sm:$0xff]
    %v957 = vld [vmem:[#allocation3 + $0xa8] sm:$0xff]
    %v958 = vld [vmem:[#allocation3 + $0xb0] sm:$0xff]
    %v959 = vld [vmem:[#allocation3 + $0xb8] sm:$0xff]
    %v960 = vld [vmem:[#allocation3 + $0xc0] sm:$0xff]
    %v961 = vld [vmem:[#allocation3 + $0xc8] sm:$0xff]
    %v962 = vld [vmem:[#allocation3 + $0xd0] sm:$0xff]
    %v963 = vld [vmem:[#allocation3 + $0xd8] sm:$0xff]
    %v964 = vld [vmem:[#allocation3 + $0xe0] sm:$0xff]
    %v965 = vld [vmem:[#allocation3 + $0xe8] sm:$0xff]
    %v966 = vld [vmem:[#allocation3 + $0xf0] sm:$0xff]
    %v967 = vld [vmem:[#allocation3 + $0xf8] sm:$0xff]
    %v1000 = vunpack.c.l.b16 %v936
    %v1001 = vunpack.c.h.b16 %v936
    %v1002 = vunpack.c.l.b16 %v937
    %v1003 = vunpack.c.h.b16 %v937
    %v1004 = vunpack.c.l.b16 %v938
    %v1005 = vunpack.c.h.b16 %v938
    %v1006 = vunpack.c.l.b16 %v939
    %v1007 = vunpack.c.h.b16 %v939
    %v1008 = vunpack.c.l.b16 %v940
    %v1009 = vunpack.c.h.b16 %v940
    %v1010 = vunpack.c.l.b16 %v941
    %v1011 = vunpack.c.h.b16 %v941
    %v1012 = vunpack.c.l.b16 %v942
    %v1013 = vunpack.c.h.b16 %v942
    %v1014 = vunpack.c.l.b16 %v943
    %v1015 = vunpack.c.h.b16 %v943
    %v1016 = vunpack.c.l.b16 %v944
    %v1017 = vunpack.c.h.b16 %v944
    %v1018 = vunpack.c.l.b16 %v945
    %v1019 = vunpack.c.h.b16 %v945
    %v1020 = vunpack.c.l.b16 %v946
    %v1021 = vunpack.c.h.b16 %v946
    %v1022 = vunpack.c.l.b16 %v947
    %v1023 = vunpack.c.h.b16 %v947
    %v1024 = vunpack.c.l.b16 %v948
    %v1025 = vunpack.c.h.b16 %v948
    %v1026 = vunpack.c.l.b16 %v949
    %v1027 = vunpack.c.h.b16 %v949
    %v1028 = vunpack.c.l.b16 %v950
    %v1029 = vunpack.c.h.b16 %v950
    %v1030 = vunpack.c.l.b16 %v951
    %v1031 = vunpack.c.h.b16 %v951
    %v1032 = vunpack.c.l.b16 %v952
    %v1033 = vunpack.c.h.b16 %v952
    %v1034 = vunpack.c.l.b16 %v953
    %v1035 = vunpack.c.h.b16 %v953
    %v1036 = vunpack.c.l.b16 %v954
    %v1037 = vunpack.c.h.b16 %v954
    %v1038 = vunpack.c.l.b16 %v955
    %v1039 = vunpack.c.h.b16 %v955
    %v1040 = vunpack.c.l.b16 %v956
    %v1041 = vunpack.c.h.b16 %v956
    %v1042 = vunpack.c.l.b16 %v957
    %v1043 = vunpack.c.h.b16 %v957
    %v1044 = vunpack.c.l.b16 %v958
    %v1045 = vunpack.c.h.b16 %v958
    %v1046 = vunpack.c.l.b16 %v959
    %v1047 = vunpack.c.h.b16 %v959
    %v1048 = vunpack.c.l.b16 %v960
    %v1049 = vunpack.c.h.b16 %v960
    %v1050 = vunpack.c.l.b16 %v961
    %v1051 = vunpack.c.h.b16 %v961
    %v1052 = vunpack.c.l.b16 %v962
    %v1053 = vunpack.c.h.b16 %v962
    %v1054 = vunpack.c.l.b16 %v963
    %v1055 = vunpack.c.h.b16 %v963
    %v1056 = vunpack.c.l.b16 %v964
    %v1057 = vunpack.c.h.b16 %v964
    %v1058 = vunpack.c.l.b16 %v965
    %v1059 = vunpack.c.h.b16 %v965
    %v1060 = vunpack.c.l.b16 %v966
    %v1061 = vunpack.c.h.b16 %v966
    %v1062 = vunpack.c.l.b16 %v967
    %v1063 = vunpack.c.h.b16 %v967
    %v1064 = vpack.c.b16 %v1002, %v1000
    %v1065 = vpack.c.b16 %v1003, %v1001
    %v1066 = vpack.c.b16 %v1006, %v1004
    %v1067 = vpack.c.b16 %v1007, %v1005
    %v1068 = vpack.c.b16 %v1010, %v1008
    %v1069 = vpack.c.b16 %v1011, %v1009
    %v1070 = vpack.c.b16 %v1014, %v1012
    %v1071 = vpack.c.b16 %v1015, %v1013
    %v1072 = vpack.c.b16 %v1018, %v1016
    %v1073 = vpack.c.b16 %v1019, %v1017
    %v1074 = vpack.c.b16 %v1022, %v1020
    %v1075 = vpack.c.b16 %v1023, %v1021
    %v1076 = vpack.c.b16 %v1026, %v1024
    %v1077 = vpack.c.b16 %v1027, %v1025
    %v1078 = vpack.c.b16 %v1030, %v1028
    %v1079 = vpack.c.b16 %v1031, %v1029
    %v1080 = vpack.c.b16 %v1034, %v1032
    %v1081 = vpack.c.b16 %v1035, %v1033
    %v1082 = vpack.c.b16 %v1038, %v1036
    %v1083 = vpack.c.b16 %v1039, %v1037
    %v1084 = vpack.c.b16 %v1042, %v1040
    %v1085 = vpack.c.b16 %v1043, %v1041
    %v1086 = vpack.c.b16 %v1046, %v1044
    %v1087 = vpack.c.b16 %v1047, %v1045
    %v1088 = vpack.c.b16 %v1050, %v1048
    %v1089 = vpack.c.b16 %v1051, %v1049
    %v1090 = vpack.c.b16 %v1054, %v1052
    %v1091 = vpack.c.b16 %v1055, %v1053
    %v1092 = vpack.c.b16 %v1058, %v1056
    %v1093 = vpack.c.b16 %v1059, %v1057
    %v1094 = vpack.c.b16 %v1062, %v1060
    %v1095 = vpack.c.b16 %v1063, %v1061
    %1128 = vmatprep.subr.bf16.mxu0 %v1065
    %1129 = vmatpush1.bf16.msra.mxu0 %v1064
    %1130 = vmatprep.subr.bf16.mxu0 %v1067
    %1131 = vmatpush1.bf16.msra.mxu0 %v1066
    %1132 = vmatprep.subr.bf16.mxu0 %v1069
    %1133 = vmatpush1.bf16.msra.mxu0 %v1068
    %1134 = vmatprep.subr.bf16.mxu0 %v1071
    %1135 = vmatpush1.bf16.msra.mxu0 %v1070
    %1136 = vmatprep.subr.bf16.mxu0 %v1073
    %1137 = vmatpush1.bf16.msra.mxu0 %v1072
    %1138 = vmatprep.subr.bf16.mxu0 %v1075
    %1139 = vmatpush1.bf16.msra.mxu0 %v1074
    %1140 = vmatprep.subr.bf16.mxu0 %v1077
    %1141 = vmatpush1.bf16.msra.mxu0 %v1076
    %1142 = vmatprep.subr.bf16.mxu0 %v1079
    %1143 = vmatpush1.bf16.msra.mxu0 %v1078
    %1144 = vmatprep.subr.bf16.mxu0 %v1081
    %1145 = vmatpush1.bf16.msra.mxu0 %v1080
    %1146 = vmatprep.subr.bf16.mxu0 %v1083
    %1147 = vmatpush1.bf16.msra.mxu0 %v1082
    %1148 = vmatprep.subr.bf16.mxu0 %v1085
    %1149 = vmatpush1.bf16.msra.mxu0 %v1084
    %1150 = vmatprep.subr.bf16.mxu0 %v1087
    %1151 = vmatpush1.bf16.msra.mxu0 %v1086
    %1152 = vmatprep.subr.bf16.mxu0 %v1089
    %1153 = vmatpush1.bf16.msra.mxu0 %v1088
    %1154 = vmatprep.subr.bf16.mxu0 %v1091
    %1155 = vmatpush1.bf16.msra.mxu0 %v1090
    %1156 = vmatprep.subr.bf16.mxu0 %v1093
    %1157 = vmatpush1.bf16.msra.mxu0 %v1092
    %1158 = vmatprep.subr.bf16.mxu0 %v1095
    %1159 = vmatpush1.bf16.msra.mxu0 %v1094
    %1160 = vmatprep.mubr.bf16.mxu0 %v933
    %1161 = vmatmul.mubr.bf16.gmra.mrb[0].mxu0 %v932
    %v1162 = vpop.f32.mrb[0].mxu0
    %v1163 = vadd.f32 0.0, %v1162
    %v1164 = vpop.f32.mrb[0].mxu0
    %v1165 = vadd.f32 0.0, %v1164
    %v1166 = vpop.f32.mrb[0].mxu0
    %v1167 = vadd.f32 0.0, %v1166
    %v1168 = vpop.f32.mrb[0].mxu0
    %v1169 = vadd.f32 0.0, %v1168
    %1170 = vmatprep.mubr.bf16.mxu0 %v935
    %1171 = vmatmul.mubr.bf16.gmra.mrb[0].mxu0 %v934
    %v1172 = vpop.f32.mrb[0].mxu0
    %v1173 = vadd.f32 0.0, %v1172
    %v1174 = vpop.f32.mrb[0].mxu0
    %v1175 = vadd.f32 0.0, %v1174
    %v1176 = vpop.f32.mrb[0].mxu0
    %v1177 = vadd.f32 0.0, %v1176
    %v1178 = vpop.f32.mrb[0].mxu0
    %v1179 = vadd.f32 0.0, %v1178
    %1180 = vdwg.mxu0
    %v1181 = vld [vmem:[#allocation5] sm:$0xff]
    %v1182 = vld [vmem:[#allocation5 + $0x8] sm:$0xff]
    %v1183 = vld [vmem:[#allocation5 + $0x10] sm:$0xff]
    %v1184 = vld [vmem:[#allocation5 + $0x18] sm:$0xff]
    %v1185 = vld [vmem:[#allocation5 + $0x20] sm:$0xff]
    %v1186 = vld [vmem:[#allocation5 + $0x28] sm:$0xff]
    %v1187 = vld [vmem:[#allocation5 + $0x30] sm:$0xff]
    %v1188 = vld [vmem:[#allocation5 + $0x38] sm:$0xff]
    %v1189 = vld [vmem:[#allocation5 + $0x40] sm:$0xff]
    %v1190 = vld [vmem:[#allocation5 + $0x48] sm:$0xff]
    %v1191 = vld [vmem:[#allocation5 + $0x50] sm:$0xff]
    %v1192 = vld [vmem:[#allocation5 + $0x58] sm:$0xff]
    %v1193 = vld [vmem:[#allocation5 + $0x60] sm:$0xff]
    %v1194 = vld [vmem:[#allocation5 + $0x68] sm:$0xff]
    %v1195 = vld [vmem:[#allocation5 + $0x70] sm:$0xff]
    %v1196 = vld [vmem:[#allocation5 + $0x78] sm:$0xff]
    %v1197 = vld [vmem:[#allocation5 + $0x80] sm:$0xff]
    %v1198 = vld [vmem:[#allocation5 + $0x88] sm:$0xff]
    %v1199 = vld [vmem:[#allocation5 + $0x90] sm:$0xff]
    %v1200 = vld [vmem:[#allocation5 + $0x98] sm:$0xff]
    %v1201 = vld [vmem:[#allocation5 + $0xa0] sm:$0xff]
    %v1202 = vld [vmem:[#allocation5 + $0xa8] sm:$0xff]
    %v1203 = vld [vmem:[#allocation5 + $0xb0] sm:$0xff]
    %v1204 = vld [vmem:[#allocation5 + $0xb8] sm:$0xff]
    %v1205 = vld [vmem:[#allocation5 + $0xc0] sm:$0xff]
    %v1206 = vld [vmem:[#allocation5 + $0xc8] sm:$0xff]
    %v1207 = vld [vmem:[#allocation5 + $0xd0] sm:$0xff]
    %v1208 = vld [vmem:[#allocation5 + $0xd8] sm:$0xff]
    %v1209 = vld [vmem:[#allocation5 + $0xe0] sm:$0xff]
    %v1210 = vld [vmem:[#allocation5 + $0xe8] sm:$0xff]
    %v1211 = vld [vmem:[#allocation5 + $0xf0] sm:$0xff]
    %v1212 = vld [vmem:[#allocation5 + $0xf8] sm:$0xff]
    %v1245 = vunpack.c.l.b16 %v1181
    %v1246 = vunpack.c.h.b16 %v1181
    %v1247 = vunpack.c.l.b16 %v1182
    %v1248 = vunpack.c.h.b16 %v1182
    %v1249 = vunpack.c.l.b16 %v1183
    %v1250 = vunpack.c.h.b16 %v1183
    %v1251 = vunpack.c.l.b16 %v1184
    %v1252 = vunpack.c.h.b16 %v1184
    %v1253 = vunpack.c.l.b16 %v1185
    %v1254 = vunpack.c.h.b16 %v1185
    %v1255 = vunpack.c.l.b16 %v1186
    %v1256 = vunpack.c.h.b16 %v1186
    %v1257 = vunpack.c.l.b16 %v1187
    %v1258 = vunpack.c.h.b16 %v1187
    %v1259 = vunpack.c.l.b16 %v1188
    %v1260 = vunpack.c.h.b16 %v1188
    %v1261 = vunpack.c.l.b16 %v1189
    %v1262 = vunpack.c.h.b16 %v1189
    %v1263 = vunpack.c.l.b16 %v1190
    %v1264 = vunpack.c.h.b16 %v1190
    %v1265 = vunpack.c.l.b16 %v1191
    %v1266 = vunpack.c.h.b16 %v1191
    %v1267 = vunpack.c.l.b16 %v1192
    %v1268 = vunpack.c.h.b16 %v1192
    %v1269 = vunpack.c.l.b16 %v1193
    %v1270 = vunpack.c.h.b16 %v1193
    %v1271 = vunpack.c.l.b16 %v1194
    %v1272 = vunpack.c.h.b16 %v1194
    %v1273 = vunpack.c.l.b16 %v1195
    %v1274 = vunpack.c.h.b16 %v1195
    %v1275 = vunpack.c.l.b16 %v1196
    %v1276 = vunpack.c.h.b16 %v1196
    %v1277 = vunpack.c.l.b16 %v1197
    %v1278 = vunpack.c.h.b16 %v1197
    %v1279 = vunpack.c.l.b16 %v1198
    %v1280 = vunpack.c.h.b16 %v1198
    %v1281 = vunpack.c.l.b16 %v1199
    %v1282 = vunpack.c.h.b16 %v1199
    %v1283 = vunpack.c.l.b16 %v1200
    %v1284 = vunpack.c.h.b16 %v1200
    %v1285 = vunpack.c.l.b16 %v1201
    %v1286 = vunpack.c.h.b16 %v1201
    %v1287 = vunpack.c.l.b16 %v1202
    %v1288 = vunpack.c.h.b16 %v1202
    %v1289 = vunpack.c.l.b16 %v1203
    %v1290 = vunpack.c.h.b16 %v1203
    %v1291 = vunpack.c.l.b16 %v1204
    %v1292 = vunpack.c.h.b16 %v1204
    %v1293 = vunpack.c.l.b16 %v1205
    %v1294 = vunpack.c.h.b16 %v1205
    %v1295 = vunpack.c.l.b16 %v1206
    %v1296 = vunpack.c.h.b16 %v1206
    %v1297 = vunpack.c.l.b16 %v1207
    %v1298 = vunpack.c.h.b16 %v1207
    %v1299 = vunpack.c.l.b16 %v1208
    %v1300 = vunpack.c.h.b16 %v1208
    %v1301 = vunpack.c.l.b16 %v1209
    %v1302 = vunpack.c.h.b16 %v1209
    %v1303 = vunpack.c.l.b16 %v1210
    %v1304 = vunpack.c.h.b16 %v1210
    %v1305 = vunpack.c.l.b16 %v1211
    %v1306 = vunpack.c.h.b16 %v1211
    %v1307 = vunpack.c.l.b16 %v1212
    %v1308 = vunpack.c.h.b16 %v1212
    %v1309 = vpack.c.b16 %v1247, %v1245
    %v1310 = vpack.c.b16 %v1248, %v1246
    %v1311 = vpack.c.b16 %v1251, %v1249
    %v1312 = vpack.c.b16 %v1252, %v1250
    %v1313 = vpack.c.b16 %v1255, %v1253
    %v1314 = vpack.c.b16 %v1256, %v1254
    %v1315 = vpack.c.b16 %v1259, %v1257
    %v1316 = vpack.c.b16 %v1260, %v1258
    %v1317 = vpack.c.b16 %v1263, %v1261
    %v1318 = vpack.c.b16 %v1264, %v1262
    %v1319 = vpack.c.b16 %v1267, %v1265
    %v1320 = vpack.c.b16 %v1268, %v1266
    %v1321 = vpack.c.b16 %v1271, %v1269
    %v1322 = vpack.c.b16 %v1272, %v1270
    %v1323 = vpack.c.b16 %v1275, %v1273
    %v1324 = vpack.c.b16 %v1276, %v1274
    %v1325 = vpack.c.b16 %v1279, %v1277
    %v1326 = vpack.c.b16 %v1280, %v1278
    %v1327 = vpack.c.b16 %v1283, %v1281
    %v1328 = vpack.c.b16 %v1284, %v1282
    %v1329 = vpack.c.b16 %v1287, %v1285
    %v1330 = vpack.c.b16 %v1288, %v1286
    %v1331 = vpack.c.b16 %v1291, %v1289
    %v1332 = vpack.c.b16 %v1292, %v1290
    %v1333 = vpack.c.b16 %v1295, %v1293
    %v1334 = vpack.c.b16 %v1296, %v1294
    %v1335 = vpack.c.b16 %v1299, %v1297
    %v1336 = vpack.c.b16 %v1300, %v1298
    %v1337 = vpack.c.b16 %v1303, %v1301
    %v1338 = vpack.c.b16 %v1304, %v1302
    %v1339 = vpack.c.b16 %v1307, %v1305
    %v1340 = vpack.c.b16 %v1308, %v1306
    %1373 = vmatprep.subr.bf16.mxu0 %v1310
    %1374 = vmatpush1.bf16.msra.mxu0 %v1309
    %1375 = vmatprep.subr.bf16.mxu0 %v1312
    %1376 = vmatpush1.bf16.msra.mxu0 %v1311
    %1377 = vmatprep.subr.bf16.mxu0 %v1314
    %1378 = vmatpush1.bf16.msra.mxu0 %v1313
    %1379 = vmatprep.subr.bf16.mxu0 %v1316
    %1380 = vmatpush1.bf16.msra.mxu0 %v1315
    %1381 = vmatprep.subr.bf16.mxu0 %v1318
    %1382 = vmatpush1.bf16.msra.mxu0 %v1317
    %1383 = vmatprep.subr.bf16.mxu0 %v1320
    %1384 = vmatpush1.bf16.msra.mxu0 %v1319
    %1385 = vmatprep.subr.bf16.mxu0 %v1322
    %1386 = vmatpush1.bf16.msra.mxu0 %v1321
    %1387 = vmatprep.subr.bf16.mxu0 %v1324
    %1388 = vmatpush1.bf16.msra.mxu0 %v1323
    %1389 = vmatprep.subr.bf16.mxu0 %v1326
    %1390 = vmatpush1.bf16.msra.mxu0 %v1325
    %1391 = vmatprep.subr.bf16.mxu0 %v1328
    %1392 = vmatpush1.bf16.msra.mxu0 %v1327
    %1393 = vmatprep.subr.bf16.mxu0 %v1330
    %1394 = vmatpush1.bf16.msra.mxu0 %v1329
    %1395 = vmatprep.subr.bf16.mxu0 %v1332
    %1396 = vmatpush1.bf16.msra.mxu0 %v1331
    %1397 = vmatprep.subr.bf16.mxu0 %v1334
    %1398 = vmatpush1.bf16.msra.mxu0 %v1333
    %1399 = vmatprep.subr.bf16.mxu0 %v1336
    %1400 = vmatpush1.bf16.msra.mxu0 %v1335
    %1401 = vmatprep.subr.bf16.mxu0 %v1338
    %1402 = vmatpush1.bf16.msra.mxu0 %v1337
    %1403 = vmatprep.subr.bf16.mxu0 %v1340
    %1404 = vmatpush1.bf16.msra.mxu0 %v1339
    %1405 = vmatprep.mubr.bf16.mxu0 %v933
    %1406 = vmatmul.mubr.bf16.gmra.mrb[0].mxu0 %v932
    %v1407 = vpop.f32.mrb[0].mxu0
    %v1408 = vadd.f32 0.0, %v1407
    %v1409 = vpop.f32.mrb[0].mxu0
    %v1410 = vadd.f32 0.0, %v1409
    %v1411 = vpop.f32.mrb[0].mxu0
    %v1412 = vadd.f32 0.0, %v1411
    %v1413 = vpop.f32.mrb[0].mxu0
    %v1414 = vadd.f32 0.0, %v1413
    %1415 = vmatprep.mubr.bf16.mxu0 %v935
    %1416 = vmatmul.mubr.bf16.gmra.mrb[0].mxu0 %v934
    %v1417 = vpop.f32.mrb[0].mxu0
    %v1418 = vadd.f32 0.0, %v1417
    %v1419 = vpop.f32.mrb[0].mxu0
    %v1420 = vadd.f32 0.0, %v1419
    %v1421 = vpop.f32.mrb[0].mxu0
    %v1422 = vadd.f32 0.0, %v1421
    %v1423 = vpop.f32.mrb[0].mxu0
    %v1424 = vadd.f32 0.0, %v1423
    %1425 = vdwg.mxu0
    %v1426 = vmul.f32 %v1408, 2.0
    %v1427 = vmul.f32 %v1410, 2.0
    %v1428 = vmul.f32 %v1412, 2.0
    %v1429 = vmul.f32 %v1414, 2.0
    %v1430 = vmul.f32 %v1418, 2.0
    %v1431 = vmul.f32 %v1420, 2.0
    %v1432 = vmul.f32 %v1422, 2.0
    %v1433 = vmul.f32 %v1424, 2.0
    %v1434 = vsub.f32 %v1426, %v924
    %v1435 = vsub.f32 %v1427, %v925
    %v1436 = vsub.f32 %v1428, %v926
    %v1437 = vsub.f32 %v1429, %v927
    %v1438 = vsub.f32 %v1430, %v928
    %v1439 = vsub.f32 %v1431, %v929
    %v1440 = vsub.f32 %v1432, %v930
    %v1441 = vsub.f32 %v1433, %v931
    %1442 = vst [vmem:[#allocation2] sm:$0xff] %v932
    %1443 = vst [vmem:[#allocation2 + $0x8] sm:$0xff] %v933
    %1444 = vst [vmem:[#allocation2 + $0x10] sm:$0xff] %v934
    %1445 = vst [vmem:[#allocation2 + $0x18] sm:$0xff] %v935
    %v1446 = vpack.c.bf16 %v1167, %v1163
    %v1447 = vpack.c.bf16 %v1169, %v1165
    %v1448 = vpack.c.bf16 %v1177, %v1173
    %v1449 = vpack.c.bf16 %v1179, %v1175
    %1450 = vst [vmem:[#allocation2 + $0x20] sm:$0xff] %v1446
    %1451 = vst [vmem:[#allocation2 + $0x28] sm:$0xff] %v1447
    %1452 = vst [vmem:[#allocation2 + $0x30] sm:$0xff] %v1448
    %1453 = vst [vmem:[#allocation2 + $0x38] sm:$0xff] %v1449
    %v1454 = vpack.c.bf16 %v1436, %v1434
    %v1455 = vpack.c.bf16 %v1437, %v1435
    %v1456 = vpack.c.bf16 %v1440, %v1438
    %v1457 = vpack.c.bf16 %v1441, %v1439
    %1458 = vst [vmem:[#allocation2 + $0x40] sm:$0xff] %v1454
    %1459 = vst [vmem:[#allocation2 + $0x48] sm:$0xff] %v1455
    %1460 = vst [vmem:[#allocation2 + $0x50] sm:$0xff] %v1456
    %1461 = vst [vmem:[#allocation2 + $0x58] sm:$0xff] %v1457
    %v1462 = vld [vmem:[%s8] sm:$0xf]
    %v1463 = vld [vmem:[%s8 + $0x4] sm:$0xf]
    %v1464 = vld [vmem:[%s8 + $0x8] sm:$0xf]
    %v1465 = vld [vmem:[%s8 + $0xc] sm:$0xf]
    %v1466 = vld [vmem:[#allocation2] sm:$0xff]
    %v1467 = vld [vmem:[#allocation2 + $0x8] sm:$0xff]
    %v1468 = vld [vmem:[#allocation2 + $0x10] sm:$0xff]
    %v1469 = vld [vmem:[#allocation2 + $0x18] sm:$0xff]
    %v1470 = vld [vmem:[#allocation2 + $0x20] sm:$0xff]
    %v1471 = vld [vmem:[#allocation2 + $0x28] sm:$0xff]
    %v1472 = vld [vmem:[#allocation2 + $0x30] sm:$0xff]
    %v1473 = vld [vmem:[#allocation2 + $0x38] sm:$0xff]
    %v1474 = vld [vmem:[#allocation2 + $0x40] sm:$0xff]
    %v1475 = vld [vmem:[#allocation2 + $0x48] sm:$0xff]
    %v1476 = vld [vmem:[#allocation2 + $0x50] sm:$0xff]
    %v1477 = vld [vmem:[#allocation2 + $0x58] sm:$0xff]
    %v1478 = vld [vmem:[%s9] sm:$0xff]
    %v1479 = vld [vmem:[%s9 + $0x8] sm:$0xff]
    %v1480 = vld [vmem:[%s9 + $0x10] sm:$0xff]
    %v1481 = vld [vmem:[%s9 + $0x18] sm:$0xff]
    %1483 = vset.pattern.permute.xlu0 0
    %1484 = vperm.xlu0 %1483, %v1478
    %v1485 = vpop.permute.xlu0 %1484
    %1488 = vset.pattern.permute.xlu0 0
    %1489 = vperm.xlu0 %1488, %v1479
    %v1490 = vpop.permute.xlu0 %1489
    %1493 = vset.pattern.permute.xlu0 0
    %1494 = vperm.xlu0 %1493, %v1480
    %v1495 = vpop.permute.xlu0 %1494
    %1498 = vset.pattern.permute.xlu0 0
    %1499 = vperm.xlu0 %1498, %v1481
    %v1500 = vpop.permute.xlu0 %1499
    %v1506 = vunpack.c.l.b16 %v1462
    %v1507 = vunpack.c.l.b16 %v1463
    %v1508 = vunpack.c.l.b16 %v1464
    %v1509 = vunpack.c.l.b16 %v1465
    %v1510 = vpack.c.b16 %v1507, %v1506
    %v1511 = vpack.c.b16 %v1509, %v1508
    %v1513 = vsel %vm864, %v1510, 0
    %v1516 = vsel %vm864, %v1511, 0
    %1518 = vmatprep.subr.bf16.mxu0 %v1467
    %1519 = vmatpush1.bf16.msra.mxu0 %v1466
    %1520 = vmatprep.subr.bf16.mxu0 %v1469
    %1521 = vmatpush1.bf16.msra.mxu0 %v1468
    %1522 = vmatprep.subr.bf16.mxu0 %v1471
    %1523 = vmatpush1.bf16.msra.mxu0 %v1470
    %1524 = vmatprep.subr.bf16.mxu0 %v1473
    %1525 = vmatpush1.bf16.msra.mxu0 %v1472
    %1526 = vmatprep.subr.bf16.mxu0 %v1475
    %1527 = vmatpush1.bf16.msra.mxu0 %v1474
    %1528 = vmatprep.subr.bf16.mxu0 %v1477
    %1529 = vmatpush1.bf16.msra.mxu0 %v1476
    %1530 = vmatprep.subr.bf16.mxu0 0
    %1531 = vmatpush1.bf16.msra.mxu0 0
    %1532 = vmatprep.subr.bf16.mxu0 0
    %1533 = vmatpush1.bf16.msra.mxu0 0
    %1534 = vmatprep.subr.bf16.mxu0 0
    %1535 = vmatpush1.bf16.msra.mxu0 0
    %1536 = vmatprep.subr.bf16.mxu0 0
    %1537 = vmatpush1.bf16.msra.mxu0 0
    %1538 = vmatprep.subr.bf16.mxu0 0
    %1539 = vmatpush1.bf16.msra.mxu0 0
    %1540 = vmatprep.subr.bf16.mxu0 0
    %1541 = vmatpush1.bf16.msra.mxu0 0
    %1542 = vmatprep.subr.bf16.mxu0 0
    %1543 = vmatpush1.bf16.msra.mxu0 0
    %1544 = vmatprep.subr.bf16.mxu0 0
    %1545 = vmatpush1.bf16.msra.mxu0 0
    %1546 = vmatprep.subr.bf16.mxu0 0
    %1547 = vmatpush1.bf16.msra.mxu0 0
    %1548 = vmatprep.subr.bf16.mxu0 0
    %1549 = vmatpush1.bf16.msra.mxu0 0
    %1550 = vmatprep.mubr.bf16.mxu0 0
    %1551 = vmatmul.mubr.bf16.gmra.mrb[0].mxu0 %v1513
    %v1552 = vpop.f32.mrb[0].mxu0
    %v1553 = vadd.f32 %v1485, %v1552
    %v1554 = vpop.f32.mrb[0].mxu0
    %v1555 = vadd.f32 %v1485, %v1554
    %v1556 = vpop.f32.mrb[0].mxu0
    %v1557 = vadd.f32 %v1490, %v1556
    %v1558 = vpop.f32.mrb[0].mxu0
    %v1559 = vadd.f32 %v1490, %v1558
    %1560 = vmatprep.mubr.bf16.mxu0 0
    %1561 = vmatmul.mubr.bf16.gmra.mrb[0].mxu0 %v1516
    %v1562 = vpop.f32.mrb[0].mxu0
    %v1563 = vadd.f32 %v1495, %v1562
    %v1564 = vpop.f32.mrb[0].mxu0
    %v1565 = vadd.f32 %v1495, %v1564
    %v1566 = vpop.f32.mrb[0].mxu0
    %v1567 = vadd.f32 %v1500, %v1566
    %v1568 = vpop.f32.mrb[0].mxu0
    %v1569 = vadd.f32 %v1500, %v1568
    %1570 = vdwg.mxu0
    %v1571 = vmax.f32 %v1553, 0.0
    %v1572 = vmax.f32 %v1555, 0.0
    %v1573 = vmax.f32 %v1557, 0.0
    %v1574 = vmax.f32 %v1559, 0.0
    %v1575 = vmax.f32 %v1563, 0.0
    %v1576 = vmax.f32 %v1565, 0.0
    %v1577 = vmax.f32 %v1567, 0.0
    %v1578 = vmax.f32 %v1569, 0.0
    %v1579 = vld [vmem:[%s10] sm:$0x3]
    %v1580 = vpack.c.bf16 %v1573, %v1571
    %v1581 = vpack.c.bf16 %v1574, %v1572
    %v1582 = vpack.c.bf16 %v1577, %v1575
    %v1583 = vpack.c.bf16 %v1578, %v1576
    %v1584 = vld [vmem:[%s11] sm:$0x7]
    %1586 = vset.pattern.permute.xlu0 0
    %1587 = vperm.xlu0 %1586, %v1584
    %v1588 = vpop.permute.xlu0 %1587
    %vm1590 = vcmask 261120
    %v1592 = vsel %vm1590, %v1579, 0
    %1594 = vmatprep.subr.bf16.mxu0 %v1581
    %1595 = vmatpush1.bf16.msra.mxu0 %v1580
    %1596 = vmatprep.subr.bf16.mxu0 %v1583
    %1597 = vmatpush1.bf16.msra.mxu0 %v1582
    %1598 = vmatprep.subr.bf16.mxu0 0
    %1599 = vmatpush1.bf16.msra.mxu0 0
    %1600 = vmatprep.subr.bf16.mxu0 0
    %1601 = vmatpush1.bf16.msra.mxu0 0
    %1602 = vmatprep.subr.bf16.mxu0 0
    %1603 = vmatpush1.bf16.msra.mxu0 0
    %1604 = vmatprep.subr.bf16.mxu0 0
    %1605 = vmatpush1.bf16.msra.mxu0 0
    %1606 = vmatprep.subr.bf16.mxu0 0
    %1607 = vmatpush1.bf16.msra.mxu0 0
    %1608 = vmatprep.subr.bf16.mxu0 0
    %1609 = vmatpush1.bf16.msra.mxu0 0
    %1610 = vmatprep.subr.bf16.mxu0 0
    %1611 = vmatpush1.bf16.msra.mxu0 0
    %1612 = vmatprep.subr.bf16.mxu0 0
    %1613 = vmatpush1.bf16.msra.mxu0 0
    %1614 = vmatprep.subr.bf16.mxu0 0
    %1615 = vmatpush1.bf16.msra.mxu0 0
    %1616 = vmatprep.subr.bf16.mxu0 0
    %1617 = vmatpush1.bf16.msra.mxu0 0
    %1618 = vmatprep.subr.bf16.mxu0 0
    %1619 = vmatpush1.bf16.msra.mxu0 0
    %1620 = vmatprep.subr.bf16.mxu0 0
    %1621 = vmatpush1.bf16.msra.mxu0 0
    %1622 = vmatprep.subr.bf16.mxu0 0
    %1623 = vmatpush1.bf16.msra.mxu0 0
    %1624 = vmatprep.subr.bf16.mxu0 0
    %1625 = vmatpush1.bf16.msra.mxu0 0
    %1626 = vmatprep.mubr.bf16.mxu0 0
    %1627 = vmatmul.mubr.bf16.gmra.mrb[0].mxu0 %v1592
    %v1628 = vpop.f32.mrb[0].mxu0
    %v1629 = vadd.f32 %v1588, %v1628
    %v1630 = vpop.f32.mrb[0].mxu0
    %v1631 = vadd.f32 %v1588, %v1630
    %v1632 = vpop.f32.mrb[0].mxu0
    %v1633 = vpop.f32.mrb[0].mxu0
    %1634 = vdwg.mxu0
    %v1637 = vcombine.low %v1629, %v1631
    %1639 = vst [vmem:[%s13] sm:$0x77] %v1637
    %v1640 = vld [vmem:[#allocation7] sm:$0xff]
    %v1641 = vld [vmem:[#allocation7 + $0x8] sm:$0xff]
    %v1642 = vld [vmem:[#allocation7 + $0x10] sm:$0xff]
    %v1643 = vld [vmem:[#allocation7 + $0x18] sm:$0xff]
    %v1644 = vld [vmem:[#allocation7 + $0x20] sm:$0xff]
    %v1645 = vld [vmem:[#allocation7 + $0x28] sm:$0xff]
    %v1646 = vld [vmem:[#allocation7 + $0x30] sm:$0xff]
    %v1647 = vld [vmem:[#allocation7 + $0x38] sm:$0xff]
    %v1648 = vld [vmem:[#allocation7 + $0x40] sm:$0xff]
    %v1649 = vld [vmem:[#allocation7 + $0x48] sm:$0xff]
    %v1650 = vld [vmem:[#allocation7 + $0x50] sm:$0xff]
    %v1651 = vld [vmem:[#allocation7 + $0x58] sm:$0xff]
    %v1652 = vld [vmem:[#allocation7 + $0x60] sm:$0xff]
    %v1653 = vld [vmem:[#allocation7 + $0x68] sm:$0xff]
    %v1654 = vld [vmem:[#allocation7 + $0x70] sm:$0xff]
    %v1655 = vld [vmem:[#allocation7 + $0x78] sm:$0xff]
    %v1656 = vld [vmem:[#allocation7 + $0x80] sm:$0xff]
    %v1657 = vld [vmem:[#allocation7 + $0x88] sm:$0xff]
    %v1658 = vld [vmem:[#allocation7 + $0x90] sm:$0xff]
    %v1659 = vld [vmem:[#allocation7 + $0x98] sm:$0xff]
    %v1660 = vld [vmem:[#allocation7 + $0xa0] sm:$0xff]
    %v1661 = vld [vmem:[#allocation7 + $0xa8] sm:$0xff]
    %v1662 = vld [vmem:[#allocation7 + $0xb0] sm:$0xff]
    %v1663 = vld [vmem:[#allocation7 + $0xb8] sm:$0xff]
    %v1664 = vld [vmem:[#allocation7 + $0xc0] sm:$0xff]
    %v1665 = vld [vmem:[#allocation7 + $0xc8] sm:$0xff]
    %v1666 = vld [vmem:[#allocation7 + $0xd0] sm:$0xff]
    %v1667 = vld [vmem:[#allocation7 + $0xd8] sm:$0xff]
    %v1668 = vld [vmem:[#allocation7 + $0xe0] sm:$0xff]
    %v1669 = vld [vmem:[#allocation7 + $0xe8] sm:$0xff]
    %v1670 = vld [vmem:[#allocation7 + $0xf0] sm:$0xff]
    %v1671 = vld [vmem:[#allocation7 + $0xf8] sm:$0xff]
    %1672 = vmatprep.subr.mxu0 0.0
    %1673 = vmatpush1.msra.mxu0 %v1640
    %1674 = vmatprep.subr.mxu0 0.0
    %1675 = vmatpush1.msra.mxu0 %v1641
    %1676 = vmatprep.subr.mxu0 0.0
    %1677 = vmatpush1.msra.mxu0 %v1642
    %1678 = vmatprep.subr.mxu0 0.0
    %1679 = vmatpush1.msra.mxu0 %v1643
    %1680 = vmatprep.subr.mxu0 0.0
    %1681 = vmatpush1.msra.mxu0 %v1644
    %1682 = vmatprep.subr.mxu0 0.0
    %1683 = vmatpush1.msra.mxu0 %v1645
    %1684 = vmatprep.subr.mxu0 0.0
    %1685 = vmatpush1.msra.mxu0 %v1646
    %1686 = vmatprep.subr.mxu0 0.0
    %1687 = vmatpush1.msra.mxu0 %v1647
    %1688 = vmatprep.subr.mxu0 0.0
    %1689 = vmatpush1.msra.mxu0 %v1648
    %1690 = vmatprep.subr.mxu0 0.0
    %1691 = vmatpush1.msra.mxu0 %v1649
    %1692 = vmatprep.subr.mxu0 0.0
    %1693 = vmatpush1.msra.mxu0 %v1650
    %1694 = vmatprep.subr.mxu0 0.0
    %1695 = vmatpush1.msra.mxu0 %v1651
    %1696 = vmatprep.subr.mxu0 0.0
    %1697 = vmatpush1.msra.mxu0 %v1652
    %1698 = vmatprep.subr.mxu0 0.0
    %1699 = vmatpush1.msra.mxu0 %v1653
    %1700 = vmatprep.subr.mxu0 0.0
    %1701 = vmatpush1.msra.mxu0 %v1654
    %1702 = vmatprep.subr.mxu0 0.0
    %1703 = vmatpush1.msra.mxu0 %v1655
    %1704 = vmatprep.subr.mxu0 0.0
    %1705 = vmatpush1.msra.mxu0 %v1656
    %1706 = vmatprep.subr.mxu0 0.0
    %1707 = vmatpush1.msra.mxu0 %v1657
    %1708 = vmatprep.subr.mxu0 0.0
    %1709 = vmatpush1.msra.mxu0 %v1658
    %1710 = vmatprep.subr.mxu0 0.0
    %1711 = vmatpush1.msra.mxu0 %v1659
    %1712 = vmatprep.subr.mxu0 0.0
    %1713 = vmatpush1.msra.mxu0 %v1660
    %1714 = vmatprep.subr.mxu0 0.0
    %1715 = vmatpush1.msra.mxu0 %v1661
    %1716 = vmatprep.subr.mxu0 0.0
    %1717 = vmatpush1.msra.mxu0 %v1662
    %1718 = vmatprep.subr.mxu0 0.0
    %1719 = vmatpush1.msra.mxu0 %v1663
    %1720 = vmatprep.subr.mxu0 0.0
    %1721 = vmatpush1.msra.mxu0 %v1664
    %1722 = vmatprep.subr.mxu0 0.0
    %1723 = vmatpush1.msra.mxu0 %v1665
    %1724 = vmatprep.subr.mxu0 0.0
    %1725 = vmatpush1.msra.mxu0 %v1666
    %1726 = vmatprep.subr.mxu0 0.0
    %1727 = vmatpush1.msra.mxu0 %v1667
    %1728 = vmatprep.subr.mxu0 0.0
    %1729 = vmatpush1.msra.mxu0 %v1668
    %1730 = vmatprep.subr.mxu0 0.0
    %1731 = vmatpush1.msra.mxu0 %v1669
    %1732 = vmatprep.subr.mxu0 0.0
    %1733 = vmatpush1.msra.mxu0 %v1670
    %1734 = vmatprep.subr.mxu0 0.0
    %1735 = vmatpush1.msra.mxu0 %v1671
    %1736 = vmatprep.mubr.f32.mxu0 %v1631
    %1737 = vmatmul.mubr.f32.gmra.mrb[0].mxu0 %v1629
    %v1738 = vpop.f32.mrb[0].mxu0
    %v1739 = vadd.f32 0.0, %v1738
    %v1740 = vpop.f32.mrb[0].mxu0
    %1741 = vdwg.mxu0
    %1742 = vst [vmem:[%s13 + $0x8] sm:$0x7] %v1739
    // Predicated region
    $region66: #{pointcloud2mesh_forward.1} parent=1 // pred_check
      _
    $region67: #{pointcloud2mesh_forward.1} parent=1 // pred_check_branch
      %1744 = sbr.rel (0) target = $region69
    $region68: #{pointcloud2mesh_forward.1} parent=1 // pred_region
      _
    $region69: #{pointcloud2mesh_forward.1} parent=1 // pred_fallthru
      _
    // Predicated region
    $region70: #{pointcloud2mesh_forward.1} parent=1 // pred_check
      _
    $region71: #{pointcloud2mesh_forward.1} parent=1 // pred_check_branch
      %1746 = sbr.rel (0) target = $region73
    $region72: #{pointcloud2mesh_forward.1} parent=1 // pred_region
      _
    $region73: #{pointcloud2mesh_forward.1} parent=1 // pred_fallthru
      _
    %1747 = vsyncpa [#allocation4], 1
    %1748 = vsyncpa [#allocation6], 1

</llo_original>
